<compile_context>
chip_gen: v5e
topology: v5e:2x2
jax: 0.10.0
libtpu: 0.0.40
codegen_flags: <defaults>
</compile_context>

<pallas_src>
import jax
import jax.numpy as jnp
from jax import lax
from jax.experimental import pallas as pl
from jax.experimental.pallas import tpu as pltpu

TABPFN_HIDDEN_DIM = 512


def _round_up(x, m):
    return ((x + m - 1) // m) * m


def _const_spec(shape):
    ndim = len(shape)
    return pl.BlockSpec(shape, lambda i: (0,) * ndim)


# ----------------------------------------------------------------------------
# Kernel A: context K/V precompute (query independent, runs once).
#   xc_aug (C, F_pad) [features + label column], wx_aug (F_pad, H) -> k, v (C, H)
# ----------------------------------------------------------------------------
def _context_kv_kernel(xc_ref, wx_ref, wk_ref, wv_ref, k_ref, v_ref):
    h_c = jnp.dot(xc_ref[...], wx_ref[...],
                  preferred_element_type=jnp.float32).astype(jnp.bfloat16)
    k = jnp.dot(h_c, wk_ref[...], preferred_element_type=jnp.float32)
    v = jnp.dot(h_c, wv_ref[...], preferred_element_type=jnp.float32)
    k_ref[...] = k.astype(k_ref.dtype)
    v_ref[...] = v.astype(v_ref.dtype)


# ----------------------------------------------------------------------------
# Kernel B: per-query-tile in-context encoder.
#   xq (TB, F_pad) attends over precomputed k, v (C, H) -> emb (TB, H)
#   (1/sqrt(H) scale is pre-folded into wq by the wrapper.)
# ----------------------------------------------------------------------------
def _encoder_kernel(xq_ref, k_ref, v_ref, wx_ref, wq_ref, wo_ref, out_ref):
    h_q = jnp.dot(xq_ref[...], wx_ref[...],
                  preferred_element_type=jnp.float32)                      # (TB, H)
    q = jnp.dot(h_q.astype(jnp.bfloat16), wq_ref[...],
                preferred_element_type=jnp.float32)                        # (TB, H)
    # s = q @ k^T without materializing a transpose of k
    s = lax.dot_general(q.astype(jnp.bfloat16), k_ref[...],
                        dimension_numbers=(((1,), (1,)), ((), ())),
                        preferred_element_type=jnp.float32)                # (TB, C)
    # softmax over context rows (f32 statistics)
    m = jnp.max(s, axis=-1, keepdims=True)
    p = jnp.exp(s - m)
    p = p * pl.reciprocal(jnp.sum(p, axis=-1, keepdims=True), approx=True)
    o = jnp.dot(p.astype(jnp.bfloat16), v_ref[...],
                preferred_element_type=jnp.float32)                        # (TB, H)
    emb = jnp.maximum(
        jnp.dot(o.astype(jnp.bfloat16), wo_ref[...],
                preferred_element_type=jnp.float32), 0.0)                  # (TB, H)
    out_ref[...] = emb.astype(out_ref.dtype)


# ----------------------------------------------------------------------------
# Kernel C: classifier head (2-layer MLP), lane-dense padded output.
#   emb (TN, H) -> logits (TN, K_pad)  with K_pad a multiple of 128
# ----------------------------------------------------------------------------
def _classifier_kernel(emb_ref, w1_ref, b1_ref, w2_ref, b2_ref, out_ref):
    h = jnp.dot(emb_ref[...], w1_ref[...], preferred_element_type=jnp.float32)
    h = jnp.maximum(h + b1_ref[...], 0.0)
    logits = jnp.dot(h.astype(jnp.bfloat16), w2_ref[...],
                     preferred_element_type=jnp.float32) + b2_ref[...]
    out_ref[...] = logits.astype(out_ref.dtype)


# ----------------------------------------------------------------------------
# Wrappers
# ----------------------------------------------------------------------------
def tabmda_encode(x_to_encode, x_context, y_context, enc_params, *, tile_b=256):
    """TabMDA.encode: returns (B, 1, TABPFN_HIDDEN_DIM) embeddings."""
    H = TABPFN_HIDDEN_DIM
    B, F = x_to_encode.shape
    C = x_context.shape[0]
    yc = y_context.reshape(-1).astype(jnp.float32)

    # Fold the label embedding into the feature matmul (extra feature column /
    # extra wx row) and zero-pad the feature axis to a multiple of 128 lanes.
    F_pad = max(128, _round_up(F + 1, 128))
    xq = jnp.zeros((B, F_pad), jnp.float32).at[:, :F].set(
        x_to_encode.astype(jnp.float32))
    xc = jnp.zeros((C, F_pad), jnp.float32).at[:, :F].set(
        x_context.astype(jnp.float32))
    xc = xc.at[:, F].set(yc)
    wx_aug = jnp.zeros((F_pad, H), jnp.float32)
    wx_aug = wx_aug.at[:F].set(enc_params["wx"])
    wx_aug = wx_aug.at[F].set(enc_params["wy"][0])

    # bf16 operands for the MXU (f32 accumulation inside the kernels); the
    # 1/sqrt(H) attention scale is folded into wq.
    scale = 1.0 / jnp.sqrt(jnp.float32(H))
    xq = xq.astype(jnp.bfloat16)
    xc = xc.astype(jnp.bfloat16)
    wx_aug = wx_aug.astype(jnp.bfloat16)
    wq = (enc_params["wq"] * scale).astype(jnp.bfloat16)
    wk = enc_params["wk"].astype(jnp.bfloat16)
    wv = enc_params["wv"].astype(jnp.bfloat16)
    wo = enc_params["wo"].astype(jnp.bfloat16)

    # ---- context K/V: computed once, not per query tile --------------------
    k, v = pl.pallas_call(
        _context_kv_kernel,
        out_shape=(jax.ShapeDtypeStruct((C, H), jnp.bfloat16),
                   jax.ShapeDtypeStruct((C, H), jnp.bfloat16)),
        grid_spec=pltpu.PrefetchScalarGridSpec(
            num_scalar_prefetch=0,
            grid=(1,),
            in_specs=[_const_spec(xc.shape), _const_spec(wx_aug.shape),
                      _const_spec(wk.shape), _const_spec(wv.shape)],
            out_specs=(_const_spec((C, H)), _const_spec((C, H)))),
        compiler_params=pltpu.CompilerParams(
            dimension_semantics=("arbitrary",)),
    )(xc, wx_aug, wk, wv)

    # ---- query tiles over B, parallel grid axis -----------------------------
    tb = min(tile_b, _round_up(B, 16))       # sublane multiple (bf16 tiles)
    B_pad = _round_up(B, tb)
    if B_pad != B:
        xq = jnp.zeros((B_pad, F_pad), jnp.bfloat16).at[:B].set(xq)

    emb = pl.pallas_call(
        _encoder_kernel,
        out_shape=jax.ShapeDtypeStruct((B_pad, H), jnp.float32),
        grid_spec=pltpu.PrefetchScalarGridSpec(
            num_scalar_prefetch=0,
            grid=(B_pad // tb,),
            in_specs=[pl.BlockSpec((tb, F_pad), lambda i: (i, 0)),
                      _const_spec((C, H)),        # k  (resident)
                      _const_spec((C, H)),        # v  (resident)
                      _const_spec((F_pad, H)),    # wx (resident)
                      _const_spec((H, H)),        # wq (resident)
                      _const_spec((H, H))],       # wo (resident)
            out_specs=pl.BlockSpec((tb, H), lambda i: (i, 0))),
        compiler_params=pltpu.CompilerParams(
            dimension_semantics=("parallel",)),
    )(xq, k, v, wx_aug, wq, wo)

    # TabPFN encode returns one embedding per query per context -> (B, 1, H)
    return emb[:B, None, :]


def stack_embeddings_to_dataset(x_batch_enc, y):
    """(B, num_contexts, H) -> (B*num_contexts, H); labels repeated per context."""
    B, nc, H = x_batch_enc.shape
    return x_batch_enc.reshape(B * nc, H), jnp.repeat(y, nc)


def tabmda_classify(emb, clf_params, as_probabilities=False, *, tile_n=256):
    """TabMDA.classify: MLP head on the 512-d embeddings (lane-dense output)."""
    H = TABPFN_HIDDEN_DIM
    N = emb.shape[0]
    Hc = clf_params["w1"].shape[1]
    K = clf_params["w2"].shape[1]
    K_pad = max(128, _round_up(K, 128))

    w1 = clf_params["w1"].astype(jnp.bfloat16)
    b1 = clf_params["b1"].reshape(1, Hc).astype(jnp.float32)
    w2 = jnp.zeros((Hc, K_pad), jnp.float32).at[:, :K].set(
        clf_params["w2"]).astype(jnp.bfloat16)
    b2 = jnp.zeros((1, K_pad), jnp.float32).at[:, :K].set(
        clf_params["b2"].reshape(1, K))

    tn = min(tile_n, _round_up(N, 16))
    N_pad = _round_up(N, tn)
    emb_b = emb.astype(jnp.bfloat16)
    if N_pad != N:
        emb_b = jnp.zeros((N_pad, H), jnp.bfloat16).at[:N].set(emb_b)

    logits = pl.pallas_call(
        _classifier_kernel,
        out_shape=jax.ShapeDtypeStruct((N_pad, K_pad), jnp.float32),
        grid_spec=pltpu.PrefetchScalarGridSpec(
            num_scalar_prefetch=0,
            grid=(N_pad // tn,),
            in_specs=[pl.BlockSpec((tn, H), lambda i: (i, 0)),
                      _const_spec((H, Hc)), _const_spec((1, Hc)),
                      _const_spec((Hc, K_pad)), _const_spec((1, K_pad))],
            out_specs=pl.BlockSpec((tn, K_pad), lambda i: (i, 0))),
        compiler_params=pltpu.CompilerParams(
            dimension_semantics=("parallel",)),
    )(emb_b, w1, b1, w2, b2)

    logits = logits[:N, :K]
    if as_probabilities:
        return jax.nn.softmax(logits, axis=-1)
    return logits


def tabmda_encode_batch(batch, enc_params):
    """TabMDA.encode_batch, single-context path (num_contexts <= 1, no SMOTE)."""
    x, y = batch["x"], batch["y"]
    x_context = batch["x_context"][0]
    y_context = batch["y_context"][0]
    x_batch_enc = tabmda_encode(x, x_context, y_context, enc_params)   # (B, 1, 512)
    return stack_embeddings_to_dataset(x_batch_enc, y)
    # TODO(synk): context_subsetting (stratified train_test_split with per-context
    # random sizes) and SMOTE augmentation are host-side data-dependent ops with
    # no Pallas equivalent; only the default single-context path is implemented.


def init_params(key, num_features, num_classes, clf_hidden=128):
    H = TABPFN_HIDDEN_DIM
    ks = jax.random.split(key, 8)

    def lin(k, fan_in, shape):
        return (jax.random.normal(k, shape, jnp.float32)
                / jnp.sqrt(jnp.float32(fan_in)))

    enc = {
        "wx": lin(ks[0], num_features, (num_features, H)),
        "wy": lin(ks[1], 1, (1, H)),
        "wq": lin(ks[2], H, (H, H)),
        "wk": lin(ks[3], H, (H, H)),
        "wv": lin(ks[4], H, (H, H)),
        "wo": lin(ks[5], H, (H, H)),
    }
    clf = {
        "w1": lin(ks[6], H, (H, clf_hidden)),
        "b1": jnp.zeros((1, clf_hidden), jnp.float32),
        "w2": lin(ks[7], clf_hidden, (clf_hidden, num_classes)),
        "b2": jnp.zeros((1, num_classes), jnp.float32),
    }
    return enc, clf


if __name__ == "__main__":
    key = jax.random.PRNGKey(0)
    k_data, k_param = jax.random.split(key)

    B, C, F, K = 8, 16, 16, 2          # batch, context rows, features, classes
    kx, kxc, kyc, ky = jax.random.split(k_data, 4)
    batch = {
        "x": jax.random.normal(kx, (B, F), jnp.float32),
        "y": jax.random.randint(ky, (B,), 0, K, jnp.int32),
        # mirrors the PyTorch batch convention: context stored with a leading
        # "dataset" axis and indexed [0]
        "x_context": jax.random.normal(kxc, (1, C, F), jnp.float32),
        "y_context": jax.random.randint(kyc, (1, C), 0, K, jnp.int32),
    }

    enc_params, clf_params = init_params(k_param, num_features=F, num_classes=K)

    emb, labels = tabmda_encode_batch(batch, enc_params)             # (B, 512), (B,)
    probs = tabmda_classify(emb, clf_params, as_probabilities=True)  # (B, K)

    jax.block_until_ready((emb, labels, probs))
    assert emb.shape == (B, TABPFN_HIDDEN_DIM)
    assert labels.shape == (B,)
    assert probs.shape == (B, K)
    assert bool(jnp.all(jnp.isfinite(emb))) and bool(jnp.all(jnp.isfinite(probs)))
    print("KERNEL_OK")
</pallas_src>

<mosaic_0001>
module attributes {stable_mosaic.version = 11 : i64} {
  func.func @_context_kv_kernel(%arg0: i32, %arg1: memref<16x128xbf16, #tpu.memory_space<vmem>>, %arg2: memref<128x512xbf16, #tpu.memory_space<vmem>>, %arg3: memref<512x512xbf16, #tpu.memory_space<vmem>>, %arg4: memref<512x512xbf16, #tpu.memory_space<vmem>>, %arg5: memref<16x512xbf16, #tpu.memory_space<vmem>>, %arg6: memref<16x512xbf16, #tpu.memory_space<vmem>>) attributes {dimension_semantics = [#tpu.dimension_semantics<arbitrary>], iteration_bounds = array<i64: 1>, scalar_prefetch = 0 : i64, scratch_operands = 0 : i64, tpu.core_type = #tpu.core_type<tc>, window_params = [{pipeline_mode = #tpu.pipeline_mode<synchronous>, transform_indices = @transform_0, window_bounds = array<i64: 16, 128>}, {pipeline_mode = #tpu.pipeline_mode<synchronous>, transform_indices = @transform_1, window_bounds = array<i64: 128, 512>}, {pipeline_mode = #tpu.pipeline_mode<synchronous>, transform_indices = @transform_2, window_bounds = array<i64: 512, 512>}, {pipeline_mode = #tpu.pipeline_mode<synchronous>, transform_indices = @transform_3, window_bounds = array<i64: 512, 512>}, {pipeline_mode = #tpu.pipeline_mode<synchronous>, transform_indices = @transform_4, window_bounds = array<i64: 16, 512>}, {pipeline_mode = #tpu.pipeline_mode<synchronous>, transform_indices = @transform_5, window_bounds = array<i64: 16, 512>}]} {
    %c0 = arith.constant 0 : index
    %c0_0 = arith.constant 0 : index
    %0 = vector.load %arg1[%c0, %c0_0] : memref<16x128xbf16, #tpu.memory_space<vmem>>, vector<16x128xbf16>
    %c0_1 = arith.constant 0 : index
    %c0_2 = arith.constant 0 : index
    %1 = vector.load %arg2[%c0_1, %c0_2] : memref<128x512xbf16, #tpu.memory_space<vmem>>, vector<128x512xbf16>
    %cst = arith.constant dense<0.000000e+00> : vector<16x512xf32>
    %2 = tpu.matmul %0, %1, %cst {dimension_numbers = #tpu.dot_dimension_numbers<[1], [0], [0], [1], [0, 0, 1, 1], [], []>} : vector<16x128xbf16>, vector<128x512xbf16>, vector<16x512xf32> -> vector<16x512xf32>
    %3 = arith.truncf %2 : vector<16x512xf32> to vector<16x512xbf16>
    %c0_3 = arith.constant 0 : index
    %c0_4 = arith.constant 0 : index
    %4 = vector.load %arg3[%c0_3, %c0_4] : memref<512x512xbf16, #tpu.memory_space<vmem>>, vector<512x512xbf16>
    %cst_5 = arith.constant dense<0.000000e+00> : vector<16x512xf32>
    %5 = tpu.matmul %3, %4, %cst_5 {dimension_numbers = #tpu.dot_dimension_numbers<[1], [0], [0], [1], [0, 0, 1, 1], [], []>} : vector<16x512xbf16>, vector<512x512xbf16>, vector<16x512xf32> -> vector<16x512xf32>
    %c0_6 = arith.constant 0 : index
    %c0_7 = arith.constant 0 : index
    %6 = vector.load %arg4[%c0_6, %c0_7] : memref<512x512xbf16, #tpu.memory_space<vmem>>, vector<512x512xbf16>
    %cst_8 = arith.constant dense<0.000000e+00> : vector<16x512xf32>
    %7 = tpu.matmul %3, %6, %cst_8 {dimension_numbers = #tpu.dot_dimension_numbers<[1], [0], [0], [1], [0, 0, 1, 1], [], []>} : vector<16x512xbf16>, vector<512x512xbf16>, vector<16x512xf32> -> vector<16x512xf32>
    %8 = arith.truncf %5 : vector<16x512xf32> to vector<16x512xbf16>
    %c0_9 = arith.constant 0 : index
    %c0_10 = arith.constant 0 : index
    %9 = vector.load %arg5[%c0_9, %c0_10] : memref<16x512xbf16, #tpu.memory_space<vmem>>, vector<16x512xbf16>
    tpu.vector_store %arg5[%c0_9, %c0_10], %8 {strides = array<i32>} : memref<16x512xbf16, #tpu.memory_space<vmem>>, vector<16x512xbf16>,
    %10 = arith.truncf %7 : vector<16x512xf32> to vector<16x512xbf16>
    %c0_11 = arith.constant 0 : index
    %c0_12 = arith.constant 0 : index
    %11 = vector.load %arg6[%c0_11, %c0_12] : memref<16x512xbf16, #tpu.memory_space<vmem>>, vector<16x512xbf16>
    tpu.vector_store %arg6[%c0_11, %c0_12], %10 {strides = array<i32>} : memref<16x512xbf16, #tpu.memory_space<vmem>>, vector<16x512xbf16>,
    return
  }
  func.func @transform_0(%arg0: i32) -> (i32, i32) {
    %c0_i32 = arith.constant 0 : i32
    %c0_i32_0 = arith.constant 0 : i32
    %c0_i32_1 = arith.constant 0 : i32
    return %c0_i32, %c0_i32_0 : i32, i32
  }
  func.func @transform_1(%arg0: i32) -> (i32, i32) {
    %c0_i32 = arith.constant 0 : i32
    %c0_i32_0 = arith.constant 0 : i32
    %c0_i32_1 = arith.constant 0 : i32
    return %c0_i32, %c0_i32_0 : i32, i32
  }
  func.func @transform_2(%arg0: i32) -> (i32, i32) {
    %c0_i32 = arith.constant 0 : i32
    %c0_i32_0 = arith.constant 0 : i32
    %c0_i32_1 = arith.constant 0 : i32
    return %c0_i32, %c0_i32_0 : i32, i32
  }
  func.func @transform_3(%arg0: i32) -> (i32, i32) {
    %c0_i32 = arith.constant 0 : i32
    %c0_i32_0 = arith.constant 0 : i32
    %c0_i32_1 = arith.constant 0 : i32
    return %c0_i32, %c0_i32_0 : i32, i32
  }
  func.func @transform_4(%arg0: i32) -> (i32, i32) {
    %c0_i32 = arith.constant 0 : i32
    %c0_i32_0 = arith.constant 0 : i32
    %c0_i32_1 = arith.constant 0 : i32
    return %c0_i32, %c0_i32_0 : i32, i32
  }
  func.func @transform_5(%arg0: i32) -> (i32, i32) {
    %c0_i32 = arith.constant 0 : i32
    %c0_i32_0 = arith.constant 0 : i32
    %c0_i32_1 = arith.constant 0 : i32
    return %c0_i32, %c0_i32_0 : i32, i32
  }
}

</mosaic_0001>

<llo_original>
// kernel: tpu_custom_call.1
$region0: #{tpu_custom_call.1}
  #allocation0 [shape = 'u32[]', space=smem, size = 0x4, offset = 0x4, fixed_abs, tag = 'smem constant byte address 0x4 - core index']
  #allocation1 [shape = 'u32[72,128]{1,0:T(1,128)}', space=vmem, size = 0x9000, scoped, tag = 'internal scratch']
  %s0 = inlined_call_operand.hbm [shape: bf16[16,128], index: 0, kind: input, shape index: {}]
  %s1 = inlined_call_operand.hbm [shape: bf16[128,512], index: 1, kind: input, shape index: {}]
  %s2 = inlined_call_operand.hbm [shape: bf16[512,512], index: 2, kind: input, shape index: {}]
  %s3 = inlined_call_operand.hbm [shape: bf16[512,512], index: 3, kind: input, shape index: {}]
  %s4 = inlined_call_operand.hbm [shape: bf16[16,512], index: 4, kind: output, shape index: {0}]
  %s5 = inlined_call_operand.hbm [shape: bf16[16,512], index: 5, kind: output, shape index: {1}]
  %6 = xla_tuple %s4, %s5
  %s7 = sld [smem:[#allocation0]]
  $region50: #{tpu_custom_call.1} parent=0
    _
  %s9 = ssub.s32 1, %s7
  %s10 = scalar_select 0, %s9, %s7
  $region1: #{tpu_custom_call.1} parent=0
    #allocation2 [shape = 'u8[4096]{0}', space=vmem, size = 0x1000, scoped, tag = 'input window, operand 0, single buffered']
    #allocation3 [shape = 's32[1]{0}', space=sflag, size = 0x4, scoped, tag = 'scoped memory for tpu_custom_call.1']
    #allocation4 [shape = 's32[1]{0}', space=sflag, size = 0x4, scoped, tag = 'scoped memory for tpu_custom_call.1']
    #allocation5 [shape = 'u8[131072]{0}', space=vmem, size = 0x20000, scoped, tag = 'input window, operand 1, single buffered']
    #allocation6 [shape = 's32[1]{0}', space=sflag, size = 0x4, scoped, tag = 'scoped memory for tpu_custom_call.1']
    #allocation7 [shape = 'u8[524288]{0}', space=vmem, size = 0x80000, scoped, tag = 'input window, operand 2, single buffered']
    #allocation8 [shape = 'u8[524288]{0}', space=vmem, size = 0x80000, scoped, tag = 'input window, operand 3, single buffered']
    #allocation9 [shape = 's32[1]{0}', space=sflag, size = 0x4, scoped, tag = 'scoped memory for tpu_custom_call.1']
    #allocation10 [shape = 'u8[16384]{0}', space=vmem, size = 0x4000, scoped, tag = 'output window, operand 0, single buffered']
    #allocation11 [shape = 'u8[16384]{0}', space=vmem, size = 0x4000, scoped, tag = 'output window, operand 1, single buffered']
    #allocation12 [shape = 's32[1]{0}', space=sflag, size = 0x4, scoped, tag = 'scoped memory for tpu_custom_call.1']
    %11 = vsyncpa [#allocation3], 0
    %12 = vsyncpa [#allocation6], 0
    %13 = vsyncpa [#allocation9], 0
    %14 = vsyncpa [#allocation4], 0
    %15 = vsyncpa [#allocation12], 0
    // Predicated region
    $region2: #{tpu_custom_call.1} parent=1 // pred_check
      _
    $region3: #{tpu_custom_call.1} parent=1 // pred_check_branch
      %17 = sbr.rel (0) target = $region5
    $region4: #{tpu_custom_call.1} parent=1 // pred_region
      %19 = vsyncadd [#allocation3], 0
      %s20 = sshll.u32 %s0, 4
      %s21 = int_to_ptr.hbm [resolvable:$true] %s20
      %s22 = sshll.u32 [#allocation2], 4
      %s23 = int_to_ptr.vmem [resolvable:$true] %s22
      %28 = dma.hbm_to_vmem [thread:$0]  %s21, 128, %s23, [#allocation3], 64, 64, 4
    $region5: #{tpu_custom_call.1} parent=1 // pred_fallthru
      _
    // Predicated region
    $region6: #{tpu_custom_call.1} parent=1 // pred_check
      _
    $region7: #{tpu_custom_call.1} parent=1 // pred_check_branch
      %30 = sbr.rel (0) target = $region9
    $region8: #{tpu_custom_call.1} parent=1 // pred_region
      %32 = vsyncadd [#allocation6], 0
      %s33 = sshll.u32 %s1, 4
      %s34 = int_to_ptr.hbm [resolvable:$true] %s33
      %s35 = sshll.u32 [#allocation5], 4
      %s36 = int_to_ptr.vmem [resolvable:$true] %s35
      %41 = dma.hbm_to_vmem [thread:$0]  %s34, 4096, %s36, [#allocation6], 256, 256, 16
    $region9: #{tpu_custom_call.1} parent=1 // pred_fallthru
      _
    // Predicated region
    $region10: #{tpu_custom_call.1} parent=1 // pred_check
      _
    $region11: #{tpu_custom_call.1} parent=1 // pred_check_branch
      %43 = sbr.rel (0) target = $region13
    $region12: #{tpu_custom_call.1} parent=1 // pred_region
      %45 = vsyncadd [#allocation6], 0
      %s46 = sshll.u32 %s2, 4
      %s47 = int_to_ptr.hbm [resolvable:$true] %s46
      %s48 = sshll.u32 [#allocation7], 4
      %s49 = int_to_ptr.vmem [resolvable:$true] %s48
      %54 = dma.hbm_to_vmem [thread:$0]  %s47, 16384, %s49, [#allocation6], 256, 256, 16
    $region13: #{tpu_custom_call.1} parent=1 // pred_fallthru
      _
    // Predicated region
    $region14: #{tpu_custom_call.1} parent=1 // pred_check
      _
    $region15: #{tpu_custom_call.1} parent=1 // pred_check_branch
      %56 = sbr.rel (0) target = $region17
    $region16: #{tpu_custom_call.1} parent=1 // pred_region
      %58 = vsyncadd [#allocation9], 0
      %s59 = sshll.u32 %s3, 4
      %s60 = int_to_ptr.hbm [resolvable:$true] %s59
      %s61 = sshll.u32 [#allocation8], 4
      %s62 = int_to_ptr.vmem [resolvable:$true] %s61
      %67 = dma.hbm_to_vmem [thread:$0]  %s60, 16384, %s62, [#allocation9], 256, 256, 16
    $region17: #{tpu_custom_call.1} parent=1 // pred_fallthru
      _
    // Predicated region
    $region18: #{tpu_custom_call.1} parent=1 // pred_check
      _
    $region19: #{tpu_custom_call.1} parent=1 // pred_check_branch
      %69 = sbr.rel (0) target = $region21
    $region20: #{tpu_custom_call.1} parent=1 // pred_region
      %71 = dma.done [#allocation3], 128
    $region21: #{tpu_custom_call.1} parent=1 // pred_fallthru
      _
    // Predicated region
    $region22: #{tpu_custom_call.1} parent=1 // pred_check
      _
    $region23: #{tpu_custom_call.1} parent=1 // pred_check_branch
      %73 = sbr.rel (0) target = $region25
    $region24: #{tpu_custom_call.1} parent=1 // pred_region
      %75 = dma.done [#allocation6], 4096
    $region25: #{tpu_custom_call.1} parent=1 // pred_fallthru
      _
    // Predicated region
    $region26: #{tpu_custom_call.1} parent=1 // pred_check
      _
    $region27: #{tpu_custom_call.1} parent=1 // pred_check_branch
      %77 = sbr.rel (0) target = $region29
    $region28: #{tpu_custom_call.1} parent=1 // pred_region
      %79 = dma.done [#allocation6], 16384
    $region29: #{tpu_custom_call.1} parent=1 // pred_fallthru
      _
    // Predicated region
    $region30: #{tpu_custom_call.1} parent=1 // pred_check
      _
    $region31: #{tpu_custom_call.1} parent=1 // pred_check_branch
      %81 = sbr.rel (0) target = $region33
    $region32: #{tpu_custom_call.1} parent=1 // pred_region
      %83 = dma.done [#allocation9], 16384
    $region33: #{tpu_custom_call.1} parent=1 // pred_fallthru
      _
    %v84 = vld [vmem:[#allocation2] sm:$0xf]
    %v85 = vld [vmem:[#allocation2 + $0x4] sm:$0xf]
    %v86 = vld [vmem:[#allocation5] sm:$0xff]
    %v87 = vld [vmem:[#allocation5 + $0x8] sm:$0xff]
    %v88 = vld [vmem:[#allocation5 + $0x10] sm:$0xff]
    %v89 = vld [vmem:[#allocation5 + $0x18] sm:$0xff]
    %v90 = vld [vmem:[#allocation5 + $0x20] sm:$0xff]
    %v91 = vld [vmem:[#allocation5 + $0x28] sm:$0xff]
    %v92 = vld [vmem:[#allocation5 + $0x30] sm:$0xff]
    %v93 = vld [vmem:[#allocation5 + $0x38] sm:$0xff]
    %v94 = vld [vmem:[#allocation5 + $0x40] sm:$0xff]
    %v95 = vld [vmem:[#allocation5 + $0x48] sm:$0xff]
    %v96 = vld [vmem:[#allocation5 + $0x50] sm:$0xff]
    %v97 = vld [vmem:[#allocation5 + $0x58] sm:$0xff]
    %v98 = vld [vmem:[#allocation5 + $0x60] sm:$0xff]
    %v99 = vld [vmem:[#allocation5 + $0x68] sm:$0xff]
    %v100 = vld [vmem:[#allocation5 + $0x70] sm:$0xff]
    %v101 = vld [vmem:[#allocation5 + $0x78] sm:$0xff]
    %v102 = vld [vmem:[#allocation5 + $0x80] sm:$0xff]
    %v103 = vld [vmem:[#allocation5 + $0x88] sm:$0xff]
    %v104 = vld [vmem:[#allocation5 + $0x90] sm:$0xff]
    %v105 = vld [vmem:[#allocation5 + $0x98] sm:$0xff]
    %v106 = vld [vmem:[#allocation5 + $0xa0] sm:$0xff]
    %v107 = vld [vmem:[#allocation5 + $0xa8] sm:$0xff]
    %v108 = vld [vmem:[#allocation5 + $0xb0] sm:$0xff]
    %v109 = vld [vmem:[#allocation5 + $0xb8] sm:$0xff]
    %v110 = vld [vmem:[#allocation5 + $0xc0] sm:$0xff]
    %v111 = vld [vmem:[#allocation5 + $0xc8] sm:$0xff]
    %v112 = vld [vmem:[#allocation5 + $0xd0] sm:$0xff]
    %v113 = vld [vmem:[#allocation5 + $0xd8] sm:$0xff]
    %v114 = vld [vmem:[#allocation5 + $0xe0] sm:$0xff]
    %v115 = vld [vmem:[#allocation5 + $0xe8] sm:$0xff]
    %v116 = vld [vmem:[#allocation5 + $0xf0] sm:$0xff]
    %v117 = vld [vmem:[#allocation5 + $0xf8] sm:$0xff]
    %v120 = vunpack.c.l.b16 %v84
    %v121 = vunpack.c.l.b16 %v85
    %v122 = vpack.c.b16 %v121, %v120
    %v156 = vunpack.c.l.b16 %v86
    %v157 = vunpack.c.h.b16 %v86
    %v158 = vunpack.c.l.b16 %v87
    %v159 = vunpack.c.h.b16 %v87
    %v160 = vunpack.c.l.b16 %v88
    %v161 = vunpack.c.h.b16 %v88
    %v162 = vunpack.c.l.b16 %v89
    %v163 = vunpack.c.h.b16 %v89
    %v164 = vunpack.c.l.b16 %v90
    %v165 = vunpack.c.h.b16 %v90
    %v166 = vunpack.c.l.b16 %v91
    %v167 = vunpack.c.h.b16 %v91
    %v168 = vunpack.c.l.b16 %v92
    %v169 = vunpack.c.h.b16 %v92
    %v170 = vunpack.c.l.b16 %v93
    %v171 = vunpack.c.h.b16 %v93
    %v172 = vunpack.c.l.b16 %v94
    %v173 = vunpack.c.h.b16 %v94
    %v174 = vunpack.c.l.b16 %v95
    %v175 = vunpack.c.h.b16 %v95
    %v176 = vunpack.c.l.b16 %v96
    %v177 = vunpack.c.h.b16 %v96
    %v178 = vunpack.c.l.b16 %v97
    %v179 = vunpack.c.h.b16 %v97
    %v180 = vunpack.c.l.b16 %v98
    %v181 = vunpack.c.h.b16 %v98
    %v182 = vunpack.c.l.b16 %v99
    %v183 = vunpack.c.h.b16 %v99
    %v184 = vunpack.c.l.b16 %v100
    %v185 = vunpack.c.h.b16 %v100
    %v186 = vunpack.c.l.b16 %v101
    %v187 = vunpack.c.h.b16 %v101
    %v188 = vunpack.c.l.b16 %v102
    %v189 = vunpack.c.h.b16 %v102
    %v190 = vunpack.c.l.b16 %v103
    %v191 = vunpack.c.h.b16 %v103
    %v192 = vunpack.c.l.b16 %v104
    %v193 = vunpack.c.h.b16 %v104
    %v194 = vunpack.c.l.b16 %v105
    %v195 = vunpack.c.h.b16 %v105
    %v196 = vunpack.c.l.b16 %v106
    %v197 = vunpack.c.h.b16 %v106
    %v198 = vunpack.c.l.b16 %v107
    %v199 = vunpack.c.h.b16 %v107
    %v200 = vunpack.c.l.b16 %v108
    %v201 = vunpack.c.h.b16 %v108
    %v202 = vunpack.c.l.b16 %v109
    %v203 = vunpack.c.h.b16 %v109
    %v204 = vunpack.c.l.b16 %v110
    %v205 = vunpack.c.h.b16 %v110
    %v206 = vunpack.c.l.b16 %v111
    %v207 = vunpack.c.h.b16 %v111
    %v208 = vunpack.c.l.b16 %v112
    %v209 = vunpack.c.h.b16 %v112
    %v210 = vunpack.c.l.b16 %v113
    %v211 = vunpack.c.h.b16 %v113
    %v212 = vunpack.c.l.b16 %v114
    %v213 = vunpack.c.h.b16 %v114
    %v214 = vunpack.c.l.b16 %v115
    %v215 = vunpack.c.h.b16 %v115
    %v216 = vunpack.c.l.b16 %v116
    %v217 = vunpack.c.h.b16 %v116
    %v218 = vunpack.c.l.b16 %v117
    %v219 = vunpack.c.h.b16 %v117
    %v220 = vpack.c.b16 %v160, %v156
    %v221 = vpack.c.b16 %v161, %v157
    %v222 = vpack.c.b16 %v162, %v158
    %v223 = vpack.c.b16 %v163, %v159
    %v224 = vpack.c.b16 %v168, %v164
    %v225 = vpack.c.b16 %v169, %v165
    %v226 = vpack.c.b16 %v170, %v166
    %v227 = vpack.c.b16 %v171, %v167
    %v228 = vpack.c.b16 %v176, %v172
    %v229 = vpack.c.b16 %v177, %v173
    %v230 = vpack.c.b16 %v178, %v174
    %v231 = vpack.c.b16 %v179, %v175
    %v232 = vpack.c.b16 %v184, %v180
    %v233 = vpack.c.b16 %v185, %v181
    %v234 = vpack.c.b16 %v186, %v182
    %v235 = vpack.c.b16 %v187, %v183
    %v236 = vpack.c.b16 %v192, %v188
    %v237 = vpack.c.b16 %v193, %v189
    %v238 = vpack.c.b16 %v194, %v190
    %v239 = vpack.c.b16 %v195, %v191
    %v240 = vpack.c.b16 %v200, %v196
    %v241 = vpack.c.b16 %v201, %v197
    %v242 = vpack.c.b16 %v202, %v198
    %v243 = vpack.c.b16 %v203, %v199
    %v244 = vpack.c.b16 %v208, %v204
    %v245 = vpack.c.b16 %v209, %v205
    %v246 = vpack.c.b16 %v210, %v206
    %v247 = vpack.c.b16 %v211, %v207
    %v248 = vpack.c.b16 %v216, %v212
    %v249 = vpack.c.b16 %v217, %v213
    %v250 = vpack.c.b16 %v218, %v214
    %v251 = vpack.c.b16 %v219, %v215
    %284 = vmatpush.bf16.msra.mxu0 %v248
    %285 = vmatpush.bf16.msra.mxu0 %v244
    %286 = vmatpush.bf16.msra.mxu0 %v240
    %287 = vmatpush.bf16.msra.mxu0 %v236
    %288 = vmatpush.bf16.msra.mxu0 %v232
    %289 = vmatpush.bf16.msra.mxu0 %v228
    %290 = vmatpush.bf16.msra.mxu0 %v224
    %291 = vmatpush.bf16.msra.mxu0 %v220
    %292 = vmatmul.bf16.gmra.mxu0 %v122
    %v293 = vpop.f32.mrf.mxu0
    %v294 = vadd.f32 0.0, %v293
    %v295 = vpop.f32.mrf.mxu0
    %v296 = vadd.f32 0.0, %v295
    %297 = vdwg.mxu0
    %298 = vmatpush.bf16.msra.mxu0 %v249
    %299 = vmatpush.bf16.msra.mxu0 %v245
    %300 = vmatpush.bf16.msra.mxu0 %v241
    %301 = vmatpush.bf16.msra.mxu0 %v237
    %302 = vmatpush.bf16.msra.mxu0 %v233
    %303 = vmatpush.bf16.msra.mxu0 %v229
    %304 = vmatpush.bf16.msra.mxu0 %v225
    %305 = vmatpush.bf16.msra.mxu0 %v221
    %306 = vmatmul.bf16.gmra.mxu0 %v122
    %v307 = vpop.f32.mrf.mxu0
    %v308 = vadd.f32 0.0, %v307
    %v309 = vpop.f32.mrf.mxu0
    %v310 = vadd.f32 0.0, %v309
    %311 = vdwg.mxu0
    %312 = vmatpush.bf16.msra.mxu0 %v250
    %313 = vmatpush.bf16.msra.mxu0 %v246
    %314 = vmatpush.bf16.msra.mxu0 %v242
    %315 = vmatpush.bf16.msra.mxu0 %v238
    %316 = vmatpush.bf16.msra.mxu0 %v234
    %317 = vmatpush.bf16.msra.mxu0 %v230
    %318 = vmatpush.bf16.msra.mxu0 %v226
    %319 = vmatpush.bf16.msra.mxu0 %v222
    %320 = vmatmul.bf16.gmra.mxu0 %v122
    %v321 = vpop.f32.mrf.mxu0
    %v322 = vadd.f32 0.0, %v321
    %v323 = vpop.f32.mrf.mxu0
    %v324 = vadd.f32 0.0, %v323
    %325 = vdwg.mxu0
    %326 = vmatpush.bf16.msra.mxu0 %v251
    %327 = vmatpush.bf16.msra.mxu0 %v247
    %328 = vmatpush.bf16.msra.mxu0 %v243
    %329 = vmatpush.bf16.msra.mxu0 %v239
    %330 = vmatpush.bf16.msra.mxu0 %v235
    %331 = vmatpush.bf16.msra.mxu0 %v231
    %332 = vmatpush.bf16.msra.mxu0 %v227
    %333 = vmatpush.bf16.msra.mxu0 %v223
    %334 = vmatmul.bf16.gmra.mxu0 %v122
    %v335 = vpop.f32.mrf.mxu0
    %v336 = vadd.f32 0.0, %v335
    %v337 = vpop.f32.mrf.mxu0
    %v338 = vadd.f32 0.0, %v337
    %339 = vdwg.mxu0
    %v340 = vpack.c.bf16 %v296, %v294
    %v341 = vpack.c.bf16 %v310, %v308
    %v342 = vpack.c.bf16 %v324, %v322
    %v343 = vpack.c.bf16 %v338, %v336
    %v344 = vld [vmem:[#allocation7] sm:$0xff]
    %v345 = vld [vmem:[#allocation7 + $0x8] sm:$0xff]
    %v346 = vld [vmem:[#allocation7 + $0x10] sm:$0xff]
    %v347 = vld [vmem:[#allocation7 + $0x18] sm:$0xff]
    %v348 = vld [vmem:[#allocation7 + $0x20] sm:$0xff]
    %v349 = vld [vmem:[#allocation7 + $0x28] sm:$0xff]
    %v350 = vld [vmem:[#allocation7 + $0x30] sm:$0xff]
    %v351 = vld [vmem:[#allocation7 + $0x38] sm:$0xff]
    %v352 = vld [vmem:[#allocation7 + $0x40] sm:$0xff]
    %v353 = vld [vmem:[#allocation7 + $0x48] sm:$0xff]
    %v354 = vld [vmem:[#allocation7 + $0x50] sm:$0xff]
    %v355 = vld [vmem:[#allocation7 + $0x58] sm:$0xff]
    %v356 = vld [vmem:[#allocation7 + $0x60] sm:$0xff]
    %v357 = vld [vmem:[#allocation7 + $0x68] sm:$0xff]
    %v358 = vld [vmem:[#allocation7 + $0x70] sm:$0xff]
    %v359 = vld [vmem:[#allocation7 + $0x78] sm:$0xff]
    %v360 = vld [vmem:[#allocation7 + $0x80] sm:$0xff]
    %v361 = vld [vmem:[#allocation7 + $0x88] sm:$0xff]
    %v362 = vld [vmem:[#allocation7 + $0x90] sm:$0xff]
    %v363 = vld [vmem:[#allocation7 + $0x98] sm:$0xff]
    %v364 = vld [vmem:[#allocation7 + $0xa0] sm:$0xff]
    %v365 = vld [vmem:[#allocation7 + $0xa8] sm:$0xff]
    %v366 = vld [vmem:[#allocation7 + $0xb0] sm:$0xff]
    %v367 = vld [vmem:[#allocation7 + $0xb8] sm:$0xff]
    %v368 = vld [vmem:[#allocation7 + $0xc0] sm:$0xff]
    %v369 = vld [vmem:[#allocation7 + $0xc8] sm:$0xff]
    %v370 = vld [vmem:[#allocation7 + $0xd0] sm:$0xff]
    %v371 = vld [vmem:[#allocation7 + $0xd8] sm:$0xff]
    %v372 = vld [vmem:[#allocation7 + $0xe0] sm:$0xff]
    %v373 = vld [vmem:[#allocation7 + $0xe8] sm:$0xff]
    %v374 = vld [vmem:[#allocation7 + $0xf0] sm:$0xff]
    %v375 = vld [vmem:[#allocation7 + $0xf8] sm:$0xff]
    %v376 = vld [vmem:[#allocation7 + $0x100] sm:$0xff]
    %v377 = vld [vmem:[#allocation7 + $0x108] sm:$0xff]
    %v378 = vld [vmem:[#allocation7 + $0x110] sm:$0xff]
    %v379 = vld [vmem:[#allocation7 + $0x118] sm:$0xff]
    %v380 = vld [vmem:[#allocation7 + $0x120] sm:$0xff]
    %v381 = vld [vmem:[#allocation7 + $0x128] sm:$0xff]
    %v382 = vld [vmem:[#allocation7 + $0x130] sm:$0xff]
    %v383 = vld [vmem:[#allocation7 + $0x138] sm:$0xff]
    %v384 = vld [vmem:[#allocation7 + $0x140] sm:$0xff]
    %v385 = vld [vmem:[#allocation7 + $0x148] sm:$0xff]
    %v386 = vld [vmem:[#allocation7 + $0x150] sm:$0xff]
    %v387 = vld [vmem:[#allocation7 + $0x158] sm:$0xff]
    %v388 = vld [vmem:[#allocation7 + $0x160] sm:$0xff]
    %v389 = vld [vmem:[#allocation7 + $0x168] sm:$0xff]
    %v390 = vld [vmem:[#allocation7 + $0x170] sm:$0xff]
    %v391 = vld [vmem:[#allocation7 + $0x178] sm:$0xff]
    %v392 = vld [vmem:[#allocation7 + $0x180] sm:$0xff]
    %v393 = vld [vmem:[#allocation7 + $0x188] sm:$0xff]
    %v394 = vld [vmem:[#allocation7 + $0x190] sm:$0xff]
    %v395 = vld [vmem:[#allocation7 + $0x198] sm:$0xff]
    %v396 = vld [vmem:[#allocation7 + $0x1a0] sm:$0xff]
    %v397 = vld [vmem:[#allocation7 + $0x1a8] sm:$0xff]
    %v398 = vld [vmem:[#allocation7 + $0x1b0] sm:$0xff]
    %v399 = vld [vmem:[#allocation7 + $0x1b8] sm:$0xff]
    %v400 = vld [vmem:[#allocation7 + $0x1c0] sm:$0xff]
    %v401 = vld [vmem:[#allocation7 + $0x1c8] sm:$0xff]
    %v402 = vld [vmem:[#allocation7 + $0x1d0] sm:$0xff]
    %v403 = vld [vmem:[#allocation7 + $0x1d8] sm:$0xff]
    %v404 = vld [vmem:[#allocation7 + $0x1e0] sm:$0xff]
    %v405 = vld [vmem:[#allocation7 + $0x1e8] sm:$0xff]
    %v406 = vld [vmem:[#allocation7 + $0x1f0] sm:$0xff]
    %v407 = vld [vmem:[#allocation7 + $0x1f8] sm:$0xff]
    %v408 = vld [vmem:[#allocation7 + $0x200] sm:$0xff]
    %v409 = vld [vmem:[#allocation7 + $0x208] sm:$0xff]
    %v410 = vld [vmem:[#allocation7 + $0x210] sm:$0xff]
    %v411 = vld [vmem:[#allocation7 + $0x218] sm:$0xff]
    %v412 = vld [vmem:[#allocation7 + $0x220] sm:$0xff]
    %v413 = vld [vmem:[#allocation7 + $0x228] sm:$0xff]
    %v414 = vld [vmem:[#allocation7 + $0x230] sm:$0xff]
    %v415 = vld [vmem:[#allocation7 + $0x238] sm:$0xff]
    %v416 = vld [vmem:[#allocation7 + $0x240] sm:$0xff]
    %v417 = vld [vmem:[#allocation7 + $0x248] sm:$0xff]
    %v418 = vld [vmem:[#allocation7 + $0x250] sm:$0xff]
    %v419 = vld [vmem:[#allocation7 + $0x258] sm:$0xff]
    %v420 = vld [vmem:[#allocation7 + $0x260] sm:$0xff]
    %v421 = vld [vmem:[#allocation7 + $0x268] sm:$0xff]
    %v422 = vld [vmem:[#allocation7 + $0x270] sm:$0xff]
    %v423 = vld [vmem:[#allocation7 + $0x278] sm:$0xff]
    %v424 = vld [vmem:[#allocation7 + $0x280] sm:$0xff]
    %v425 = vld [vmem:[#allocation7 + $0x288] sm:$0xff]
    %v426 = vld [vmem:[#allocation7 + $0x290] sm:$0xff]
    %v427 = vld [vmem:[#allocation7 + $0x298] sm:$0xff]
    %v428 = vld [vmem:[#allocation7 + $0x2a0] sm:$0xff]
    %v429 = vld [vmem:[#allocation7 + $0x2a8] sm:$0xff]
    %v430 = vld [vmem:[#allocation7 + $0x2b0] sm:$0xff]
    %v431 = vld [vmem:[#allocation7 + $0x2b8] sm:$0xff]
    %v432 = vld [vmem:[#allocation7 + $0x2c0] sm:$0xff]
    %v433 = vld [vmem:[#allocation7 + $0x2c8] sm:$0xff]
    %v434 = vld [vmem:[#allocation7 + $0x2d0] sm:$0xff]
    %v435 = vld [vmem:[#allocation7 + $0x2d8] sm:$0xff]
    %v436 = vld [vmem:[#allocation7 + $0x2e0] sm:$0xff]
    %v437 = vld [vmem:[#allocation7 + $0x2e8] sm:$0xff]
    %v438 = vld [vmem:[#allocation7 + $0x2f0] sm:$0xff]
    %v439 = vld [vmem:[#allocation7 + $0x2f8] sm:$0xff]
    %v440 = vld [vmem:[#allocation7 + $0x300] sm:$0xff]
    %v441 = vld [vmem:[#allocation7 + $0x308] sm:$0xff]
    %v442 = vld [vmem:[#allocation7 + $0x310] sm:$0xff]
    %v443 = vld [vmem:[#allocation7 + $0x318] sm:$0xff]
    %v444 = vld [vmem:[#allocation7 + $0x320] sm:$0xff]
    %v445 = vld [vmem:[#allocation7 + $0x328] sm:$0xff]
    %v446 = vld [vmem:[#allocation7 + $0x330] sm:$0xff]
    %v447 = vld [vmem:[#allocation7 + $0x338] sm:$0xff]
    %v448 = vld [vmem:[#allocation7 + $0x340] sm:$0xff]
    %v449 = vld [vmem:[#allocation7 + $0x348] sm:$0xff]
    %v450 = vld [vmem:[#allocation7 + $0x350] sm:$0xff]
    %v451 = vld [vmem:[#allocation7 + $0x358] sm:$0xff]
    %v452 = vld [vmem:[#allocation7 + $0x360] sm:$0xff]
    %v453 = vld [vmem:[#allocation7 + $0x368] sm:$0xff]
    %v454 = vld [vmem:[#allocation7 + $0x370] sm:$0xff]
    %v455 = vld [vmem:[#allocation7 + $0x378] sm:$0xff]
    %v456 = vld [vmem:[#allocation7 + $0x380] sm:$0xff]
    %v457 = vld [vmem:[#allocation7 + $0x388] sm:$0xff]
    %v458 = vld [vmem:[#allocation7 + $0x390] sm:$0xff]
    %v459 = vld [vmem:[#allocation7 + $0x398] sm:$0xff]
    %v460 = vld [vmem:[#allocation7 + $0x3a0] sm:$0xff]
    %v461 = vld [vmem:[#allocation7 + $0x3a8] sm:$0xff]
    %v462 = vld [vmem:[#allocation7 + $0x3b0] sm:$0xff]
    %v463 = vld [vmem:[#allocation7 + $0x3b8] sm:$0xff]
    %v464 = vld [vmem:[#allocation7 + $0x3c0] sm:$0xff]
    %v465 = vld [vmem:[#allocation7 + $0x3c8] sm:$0xff]
    %v466 = vld [vmem:[#allocation7 + $0x3d0] sm:$0xff]
    %v467 = vld [vmem:[#allocation7 + $0x3d8] sm:$0xff]
    %v468 = vld [vmem:[#allocation7 + $0x3e0] sm:$0xff]
    %v469 = vld [vmem:[#allocation7 + $0x3e8] sm:$0xff]
    %v470 = vld [vmem:[#allocation7 + $0x3f0] sm:$0xff]
    %v471 = vld [vmem:[#allocation7 + $0x3f8] sm:$0xff]
    %v600 = vunpack.c.l.b16 %v344
    %v601 = vunpack.c.h.b16 %v344
    %v602 = vunpack.c.l.b16 %v345
    %v603 = vunpack.c.h.b16 %v345
    %v604 = vunpack.c.l.b16 %v346
    %v605 = vunpack.c.h.b16 %v346
    %v606 = vunpack.c.l.b16 %v347
    %v607 = vunpack.c.h.b16 %v347
    %v608 = vunpack.c.l.b16 %v348
    %v609 = vunpack.c.h.b16 %v348
    %v610 = vunpack.c.l.b16 %v349
    %v611 = vunpack.c.h.b16 %v349
    %v612 = vunpack.c.l.b16 %v350
    %v613 = vunpack.c.h.b16 %v350
    %v614 = vunpack.c.l.b16 %v351
    %v615 = vunpack.c.h.b16 %v351
    %v616 = vunpack.c.l.b16 %v352
    %v617 = vunpack.c.h.b16 %v352
    %v618 = vunpack.c.l.b16 %v353
    %v619 = vunpack.c.h.b16 %v353
    %v620 = vunpack.c.l.b16 %v354
    %v621 = vunpack.c.h.b16 %v354
    %v622 = vunpack.c.l.b16 %v355
    %v623 = vunpack.c.h.b16 %v355
    %v624 = vunpack.c.l.b16 %v356
    %v625 = vunpack.c.h.b16 %v356
    %v626 = vunpack.c.l.b16 %v357
    %v627 = vunpack.c.h.b16 %v357
    %v628 = vunpack.c.l.b16 %v358
    %v629 = vunpack.c.h.b16 %v358
    %v630 = vunpack.c.l.b16 %v359
    %v631 = vunpack.c.h.b16 %v359
    %v632 = vunpack.c.l.b16 %v360
    %v633 = vunpack.c.h.b16 %v360
    %v634 = vunpack.c.l.b16 %v361
    %v635 = vunpack.c.h.b16 %v361
    %v636 = vunpack.c.l.b16 %v362
    %v637 = vunpack.c.h.b16 %v362
    %v638 = vunpack.c.l.b16 %v363
    %v639 = vunpack.c.h.b16 %v363
    %v640 = vunpack.c.l.b16 %v364
    %v641 = vunpack.c.h.b16 %v364
    %v642 = vunpack.c.l.b16 %v365
    %v643 = vunpack.c.h.b16 %v365
    %v644 = vunpack.c.l.b16 %v366
    %v645 = vunpack.c.h.b16 %v366
    %v646 = vunpack.c.l.b16 %v367
    %v647 = vunpack.c.h.b16 %v367
    %v648 = vunpack.c.l.b16 %v368
    %v649 = vunpack.c.h.b16 %v368
    %v650 = vunpack.c.l.b16 %v369
    %v651 = vunpack.c.h.b16 %v369
    %v652 = vunpack.c.l.b16 %v370
    %v653 = vunpack.c.h.b16 %v370
    %v654 = vunpack.c.l.b16 %v371
    %v655 = vunpack.c.h.b16 %v371
    %v656 = vunpack.c.l.b16 %v372
    %v657 = vunpack.c.h.b16 %v372
    %v658 = vunpack.c.l.b16 %v373
    %v659 = vunpack.c.h.b16 %v373
    %v660 = vunpack.c.l.b16 %v374
    %v661 = vunpack.c.h.b16 %v374
    %v662 = vunpack.c.l.b16 %v375
    %v663 = vunpack.c.h.b16 %v375
    %v664 = vunpack.c.l.b16 %v376
    %v665 = vunpack.c.h.b16 %v376
    %v666 = vunpack.c.l.b16 %v377
    %v667 = vunpack.c.h.b16 %v377
    %v668 = vunpack.c.l.b16 %v378
    %v669 = vunpack.c.h.b16 %v378
    %v670 = vunpack.c.l.b16 %v379
    %v671 = vunpack.c.h.b16 %v379
    %v672 = vunpack.c.l.b16 %v380
    %v673 = vunpack.c.h.b16 %v380
    %v674 = vunpack.c.l.b16 %v381
    %v675 = vunpack.c.h.b16 %v381
    %v676 = vunpack.c.l.b16 %v382
    %v677 = vunpack.c.h.b16 %v382
    %v678 = vunpack.c.l.b16 %v383
    %v679 = vunpack.c.h.b16 %v383
    %v680 = vunpack.c.l.b16 %v384
    %v681 = vunpack.c.h.b16 %v384
    %v682 = vunpack.c.l.b16 %v385
    %v683 = vunpack.c.h.b16 %v385
    %v684 = vunpack.c.l.b16 %v386
    %v685 = vunpack.c.h.b16 %v386
    %v686 = vunpack.c.l.b16 %v387
    %v687 = vunpack.c.h.b16 %v387
    %v688 = vunpack.c.l.b16 %v388
    %v689 = vunpack.c.h.b16 %v388
    %v690 = vunpack.c.l.b16 %v389
    %v691 = vunpack.c.h.b16 %v389
    %v692 = vunpack.c.l.b16 %v390
    %v693 = vunpack.c.h.b16 %v390
    %v694 = vunpack.c.l.b16 %v391
    %v695 = vunpack.c.h.b16 %v391
    %v696 = vunpack.c.l.b16 %v392
    %v697 = vunpack.c.h.b16 %v392
    %v698 = vunpack.c.l.b16 %v393
    %v699 = vunpack.c.h.b16 %v393
    %v700 = vunpack.c.l.b16 %v394
    %v701 = vunpack.c.h.b16 %v394
    %v702 = vunpack.c.l.b16 %v395
    %v703 = vunpack.c.h.b16 %v395
    %v704 = vunpack.c.l.b16 %v396
    %v705 = vunpack.c.h.b16 %v396
    %v706 = vunpack.c.l.b16 %v397
    %v707 = vunpack.c.h.b16 %v397
    %v708 = vunpack.c.l.b16 %v398
    %v709 = vunpack.c.h.b16 %v398
    %v710 = vunpack.c.l.b16 %v399
    %v711 = vunpack.c.h.b16 %v399
    %v712 = vunpack.c.l.b16 %v400
    %v713 = vunpack.c.h.b16 %v400
    %v714 = vunpack.c.l.b16 %v401
    %v715 = vunpack.c.h.b16 %v401
    %v716 = vunpack.c.l.b16 %v402
    %v717 = vunpack.c.h.b16 %v402
    %v718 = vunpack.c.l.b16 %v403
    %v719 = vunpack.c.h.b16 %v403
    %v720 = vunpack.c.l.b16 %v404
    %v721 = vunpack.c.h.b16 %v404
    %v722 = vunpack.c.l.b16 %v405
    %v723 = vunpack.c.h.b16 %v405
    %v724 = vunpack.c.l.b16 %v406
    %v725 = vunpack.c.h.b16 %v406
    %v726 = vunpack.c.l.b16 %v407
    %v727 = vunpack.c.h.b16 %v407
    %v728 = vunpack.c.l.b16 %v408
    %v729 = vunpack.c.h.b16 %v408
    %v730 = vunpack.c.l.b16 %v409
    %v731 = vunpack.c.h.b16 %v409
    %v732 = vunpack.c.l.b16 %v410
    %v733 = vunpack.c.h.b16 %v410
    %v734 = vunpack.c.l.b16 %v411
    %v735 = vunpack.c.h.b16 %v411
    %v736 = vunpack.c.l.b16 %v412
    %v737 = vunpack.c.h.b16 %v412
    %v738 = vunpack.c.l.b16 %v413
    %v739 = vunpack.c.h.b16 %v413
    %v740 = vunpack.c.l.b16 %v414
    %v741 = vunpack.c.h.b16 %v414
    %v742 = vunpack.c.l.b16 %v415
    %v743 = vunpack.c.h.b16 %v415
    %v744 = vunpack.c.l.b16 %v416
    %v745 = vunpack.c.h.b16 %v416
    %v746 = vunpack.c.l.b16 %v417
    %v747 = vunpack.c.h.b16 %v417
    %v748 = vunpack.c.l.b16 %v418
    %v749 = vunpack.c.h.b16 %v418
    %v750 = vunpack.c.l.b16 %v419
    %v751 = vunpack.c.h.b16 %v419
    %v752 = vunpack.c.l.b16 %v420
    %v753 = vunpack.c.h.b16 %v420
    %v754 = vunpack.c.l.b16 %v421
    %v755 = vunpack.c.h.b16 %v421
    %v756 = vunpack.c.l.b16 %v422
    %v757 = vunpack.c.h.b16 %v422
    %v758 = vunpack.c.l.b16 %v423
    %v759 = vunpack.c.h.b16 %v423
    %v760 = vunpack.c.l.b16 %v424
    %v761 = vunpack.c.h.b16 %v424
    %v762 = vunpack.c.l.b16 %v425
    %v763 = vunpack.c.h.b16 %v425
    %v764 = vunpack.c.l.b16 %v426
    %v765 = vunpack.c.h.b16 %v426
    %v766 = vunpack.c.l.b16 %v427
    %v767 = vunpack.c.h.b16 %v427
    %v768 = vunpack.c.l.b16 %v428
    %v769 = vunpack.c.h.b16 %v428
    %v770 = vunpack.c.l.b16 %v429
    %v771 = vunpack.c.h.b16 %v429
    %v772 = vunpack.c.l.b16 %v430
    %v773 = vunpack.c.h.b16 %v430
    %v774 = vunpack.c.l.b16 %v431
    %v775 = vunpack.c.h.b16 %v431
    %v776 = vunpack.c.l.b16 %v432
    %v777 = vunpack.c.h.b16 %v432
    %v778 = vunpack.c.l.b16 %v433
    %v779 = vunpack.c.h.b16 %v433
    %v780 = vunpack.c.l.b16 %v434
    %v781 = vunpack.c.h.b16 %v434
    %v782 = vunpack.c.l.b16 %v435
    %v783 = vunpack.c.h.b16 %v435
    %v784 = vunpack.c.l.b16 %v436
    %v785 = vunpack.c.h.b16 %v436
    %v786 = vunpack.c.l.b16 %v437
    %v787 = vunpack.c.h.b16 %v437
    %v788 = vunpack.c.l.b16 %v438
    %v789 = vunpack.c.h.b16 %v438
    %v790 = vunpack.c.l.b16 %v439
    %v791 = vunpack.c.h.b16 %v439
    %v792 = vunpack.c.l.b16 %v440
    %v793 = vunpack.c.h.b16 %v440
    %v794 = vunpack.c.l.b16 %v441
    %v795 = vunpack.c.h.b16 %v441
    %v796 = vunpack.c.l.b16 %v442
    %v797 = vunpack.c.h.b16 %v442
    %v798 = vunpack.c.l.b16 %v443
    %v799 = vunpack.c.h.b16 %v443
    %v800 = vunpack.c.l.b16 %v444
    %v801 = vunpack.c.h.b16 %v444
    %v802 = vunpack.c.l.b16 %v445
    %v803 = vunpack.c.h.b16 %v445
    %v804 = vunpack.c.l.b16 %v446
    %v805 = vunpack.c.h.b16 %v446
    %v806 = vunpack.c.l.b16 %v447
    %v807 = vunpack.c.h.b16 %v447
    %v808 = vunpack.c.l.b16 %v448
    %v809 = vunpack.c.h.b16 %v448
    %v810 = vunpack.c.l.b16 %v449
    %v811 = vunpack.c.h.b16 %v449
    %v812 = vunpack.c.l.b16 %v450
    %v813 = vunpack.c.h.b16 %v450
    %v814 = vunpack.c.l.b16 %v451
    %v815 = vunpack.c.h.b16 %v451
    %v816 = vunpack.c.l.b16 %v452
    %v817 = vunpack.c.h.b16 %v452
    %v818 = vunpack.c.l.b16 %v453
    %v819 = vunpack.c.h.b16 %v453
    %v820 = vunpack.c.l.b16 %v454
    %v821 = vunpack.c.h.b16 %v454
    %v822 = vunpack.c.l.b16 %v455
    %v823 = vunpack.c.h.b16 %v455
    %v824 = vunpack.c.l.b16 %v456
    %v825 = vunpack.c.h.b16 %v456
    %v826 = vunpack.c.l.b16 %v457
    %v827 = vunpack.c.h.b16 %v457
    %v828 = vunpack.c.l.b16 %v458
    %v829 = vunpack.c.h.b16 %v458
    %v830 = vunpack.c.l.b16 %v459
    %v831 = vunpack.c.h.b16 %v459
    %v832 = vunpack.c.l.b16 %v460
    %v833 = vunpack.c.h.b16 %v460
    %v834 = vunpack.c.l.b16 %v461
    %v835 = vunpack.c.h.b16 %v461
    %v836 = vunpack.c.l.b16 %v462
    %v837 = vunpack.c.h.b16 %v462
    %v838 = vunpack.c.l.b16 %v463
    %v839 = vunpack.c.h.b16 %v463
    %v840 = vunpack.c.l.b16 %v464
    %v841 = vunpack.c.h.b16 %v464
    %v842 = vunpack.c.l.b16 %v465
    %v843 = vunpack.c.h.b16 %v465
    %v844 = vunpack.c.l.b16 %v466
    %v845 = vunpack.c.h.b16 %v466
    %v846 = vunpack.c.l.b16 %v467
    %v847 = vunpack.c.h.b16 %v467
    %v848 = vunpack.c.l.b16 %v468
    %v849 = vunpack.c.h.b16 %v468
    %v850 = vunpack.c.l.b16 %v469
    %v851 = vunpack.c.h.b16 %v469
    %v852 = vunpack.c.l.b16 %v470
    %v853 = vunpack.c.h.b16 %v470
    %v854 = vunpack.c.l.b16 %v471
    %v855 = vunpack.c.h.b16 %v471
    %v856 = vpack.c.b16 %v604, %v600
    %v857 = vpack.c.b16 %v605, %v601
    %v858 = vpack.c.b16 %v606, %v602
    %v859 = vpack.c.b16 %v607, %v603
    %v860 = vpack.c.b16 %v612, %v608
    %v861 = vpack.c.b16 %v613, %v609
    %v862 = vpack.c.b16 %v614, %v610
    %v863 = vpack.c.b16 %v615, %v611
    %v864 = vpack.c.b16 %v620, %v616
    %v865 = vpack.c.b16 %v621, %v617
    %v866 = vpack.c.b16 %v622, %v618
    %v867 = vpack.c.b16 %v623, %v619
    %v868 = vpack.c.b16 %v628, %v624
    %v869 = vpack.c.b16 %v629, %v625
    %v870 = vpack.c.b16 %v630, %v626
    %v871 = vpack.c.b16 %v631, %v627
    %v872 = vpack.c.b16 %v636, %v632
    %v873 = vpack.c.b16 %v637, %v633
    %v874 = vpack.c.b16 %v638, %v634
    %v875 = vpack.c.b16 %v639, %v635
    %v876 = vpack.c.b16 %v644, %v640
    %v877 = vpack.c.b16 %v645, %v641
    %v878 = vpack.c.b16 %v646, %v642
    %v879 = vpack.c.b16 %v647, %v643
    %v880 = vpack.c.b16 %v652, %v648
    %v881 = vpack.c.b16 %v653, %v649
    %v882 = vpack.c.b16 %v654, %v650
    %v883 = vpack.c.b16 %v655, %v651
    %v884 = vpack.c.b16 %v660, %v656
    %v885 = vpack.c.b16 %v661, %v657
    %v886 = vpack.c.b16 %v662, %v658
    %v887 = vpack.c.b16 %v663, %v659
    %v888 = vpack.c.b16 %v668, %v664
    %v889 = vpack.c.b16 %v669, %v665
    %v890 = vpack.c.b16 %v670, %v666
    %v891 = vpack.c.b16 %v671, %v667
    %v892 = vpack.c.b16 %v676, %v672
    %v893 = vpack.c.b16 %v677, %v673
    %v894 = vpack.c.b16 %v678, %v674
    %v895 = vpack.c.b16 %v679, %v675
    %v896 = vpack.c.b16 %v684, %v680
    %v897 = vpack.c.b16 %v685, %v681
    %v898 = vpack.c.b16 %v686, %v682
    %v899 = vpack.c.b16 %v687, %v683
    %v900 = vpack.c.b16 %v692, %v688
    %v901 = vpack.c.b16 %v693, %v689
    %v902 = vpack.c.b16 %v694, %v690
    %v903 = vpack.c.b16 %v695, %v691
    %v904 = vpack.c.b16 %v700, %v696
    %v905 = vpack.c.b16 %v701, %v697
    %v906 = vpack.c.b16 %v702, %v698
    %v907 = vpack.c.b16 %v703, %v699
    %v908 = vpack.c.b16 %v708, %v704
    %v909 = vpack.c.b16 %v709, %v705
    %v910 = vpack.c.b16 %v710, %v706
    %v911 = vpack.c.b16 %v711, %v707
    %v912 = vpack.c.b16 %v716, %v712
    %v913 = vpack.c.b16 %v717, %v713
    %v914 = vpack.c.b16 %v718, %v714
    %v915 = vpack.c.b16 %v719, %v715
    %v916 = vpack.c.b16 %v724, %v720
    %v917 = vpack.c.b16 %v725, %v721
    %v918 = vpack.c.b16 %v726, %v722
    %v919 = vpack.c.b16 %v727, %v723
    %v920 = vpack.c.b16 %v732, %v728
    %v921 = vpack.c.b16 %v733, %v729
    %v922 = vpack.c.b16 %v734, %v730
    %v923 = vpack.c.b16 %v735, %v731
    %v924 = vpack.c.b16 %v740, %v736
    %v925 = vpack.c.b16 %v741, %v737
    %v926 = vpack.c.b16 %v742, %v738
    %v927 = vpack.c.b16 %v743, %v739
    %v928 = vpack.c.b16 %v748, %v744
    %v929 = vpack.c.b16 %v749, %v745
    %v930 = vpack.c.b16 %v750, %v746
    %v931 = vpack.c.b16 %v751, %v747
    %v932 = vpack.c.b16 %v756, %v752
    %v933 = vpack.c.b16 %v757, %v753
    %v934 = vpack.c.b16 %v758, %v754
    %v935 = vpack.c.b16 %v759, %v755
    %v936 = vpack.c.b16 %v764, %v760
    %v937 = vpack.c.b16 %v765, %v761
    %v938 = vpack.c.b16 %v766, %v762
    %v939 = vpack.c.b16 %v767, %v763
    %v940 = vpack.c.b16 %v772, %v768
    %v941 = vpack.c.b16 %v773, %v769
    %v942 = vpack.c.b16 %v774, %v770
    %v943 = vpack.c.b16 %v775, %v771
    %v944 = vpack.c.b16 %v780, %v776
    %v945 = vpack.c.b16 %v781, %v777
    %v946 = vpack.c.b16 %v782, %v778
    %v947 = vpack.c.b16 %v783, %v779
    %v948 = vpack.c.b16 %v788, %v784
    %v949 = vpack.c.b16 %v789, %v785
    %v950 = vpack.c.b16 %v790, %v786
    %v951 = vpack.c.b16 %v791, %v787
    %v952 = vpack.c.b16 %v796, %v792
    %v953 = vpack.c.b16 %v797, %v793
    %v954 = vpack.c.b16 %v798, %v794
    %v955 = vpack.c.b16 %v799, %v795
    %v956 = vpack.c.b16 %v804, %v800
    %v957 = vpack.c.b16 %v805, %v801
    %v958 = vpack.c.b16 %v806, %v802
    %v959 = vpack.c.b16 %v807, %v803
    %v960 = vpack.c.b16 %v812, %v808
    %v961 = vpack.c.b16 %v813, %v809
    %v962 = vpack.c.b16 %v814, %v810
    %v963 = vpack.c.b16 %v815, %v811
    %v964 = vpack.c.b16 %v820, %v816
    %v965 = vpack.c.b16 %v821, %v817
    %v966 = vpack.c.b16 %v822, %v818
    %v967 = vpack.c.b16 %v823, %v819
    %v968 = vpack.c.b16 %v828, %v824
    %v969 = vpack.c.b16 %v829, %v825
    %v970 = vpack.c.b16 %v830, %v826
    %v971 = vpack.c.b16 %v831, %v827
    %v972 = vpack.c.b16 %v836, %v832
    %v973 = vpack.c.b16 %v837, %v833
    %v974 = vpack.c.b16 %v838, %v834
    %v975 = vpack.c.b16 %v839, %v835
    %v976 = vpack.c.b16 %v844, %v840
    %v977 = vpack.c.b16 %v845, %v841
    %v978 = vpack.c.b16 %v846, %v842
    %v979 = vpack.c.b16 %v847, %v843
    %v980 = vpack.c.b16 %v852, %v848
    %v981 = vpack.c.b16 %v853, %v849
    %v982 = vpack.c.b16 %v854, %v850
    %v983 = vpack.c.b16 %v855, %v851
    %1112 = vmatpush.bf16.msra.mxu0 %v884
    %1113 = vmatpush.bf16.msra.mxu0 %v880
    %1114 = vmatpush.bf16.msra.mxu0 %v876
    %1115 = vmatpush.bf16.msra.mxu0 %v872
    %1116 = vmatpush.bf16.msra.mxu0 %v868
    %1117 = vmatpush.bf16.msra.mxu0 %v864
    %1118 = vmatpush.bf16.msra.mxu0 %v860
    %1119 = vmatpush.bf16.msra.mxu0 %v856
    %1120 = vmatmul.bf16.gmra.mxu0 %v340
    %v1121 = vpop.f32.mrf.mxu0
    %v1122 = vadd.f32 0.0, %v1121
    %v1123 = vpop.f32.mrf.mxu0
    %v1124 = vadd.f32 0.0, %v1123
    %1125 = vdwg.mxu0
    %1126 = vmatpush.bf16.msra.mxu0 %v916
    %1127 = vmatpush.bf16.msra.mxu0 %v912
    %1128 = vmatpush.bf16.msra.mxu0 %v908
    %1129 = vmatpush.bf16.msra.mxu0 %v904
    %1130 = vmatpush.bf16.msra.mxu0 %v900
    %1131 = vmatpush.bf16.msra.mxu0 %v896
    %1132 = vmatpush.bf16.msra.mxu0 %v892
    %1133 = vmatpush.bf16.msra.mxu0 %v888
    %1134 = vmatmul.bf16.gmra.mxu0 %v341
    %v1135 = vpop.f32.mrf.mxu0
    %v1136 = vadd.f32 %v1122, %v1135
    %v1137 = vpop.f32.mrf.mxu0
    %v1138 = vadd.f32 %v1124, %v1137
    %1139 = vdwg.mxu0
    %1140 = vmatpush.bf16.msra.mxu0 %v948
    %1141 = vmatpush.bf16.msra.mxu0 %v944
    %1142 = vmatpush.bf16.msra.mxu0 %v940
    %1143 = vmatpush.bf16.msra.mxu0 %v936
    %1144 = vmatpush.bf16.msra.mxu0 %v932
    %1145 = vmatpush.bf16.msra.mxu0 %v928
    %1146 = vmatpush.bf16.msra.mxu0 %v924
    %1147 = vmatpush.bf16.msra.mxu0 %v920
    %1148 = vmatmul.bf16.gmra.mxu0 %v342
    %v1149 = vpop.f32.mrf.mxu0
    %v1150 = vadd.f32 %v1136, %v1149
    %v1151 = vpop.f32.mrf.mxu0
    %v1152 = vadd.f32 %v1138, %v1151
    %1153 = vdwg.mxu0
    %1154 = vmatpush.bf16.msra.mxu0 %v980
    %1155 = vmatpush.bf16.msra.mxu0 %v976
    %1156 = vmatpush.bf16.msra.mxu0 %v972
    %1157 = vmatpush.bf16.msra.mxu0 %v968
    %1158 = vmatpush.bf16.msra.mxu0 %v964
    %1159 = vmatpush.bf16.msra.mxu0 %v960
    %1160 = vmatpush.bf16.msra.mxu0 %v956
    %1161 = vmatpush.bf16.msra.mxu0 %v952
    %1162 = vmatmul.bf16.gmra.mxu0 %v343
    %v1163 = vpop.f32.mrf.mxu0
    %v1164 = vadd.f32 %v1150, %v1163
    %v1165 = vpop.f32.mrf.mxu0
    %v1166 = vadd.f32 %v1152, %v1165
    %1167 = vdwg.mxu0
    %1168 = vmatpush.bf16.msra.mxu0 %v885
    %1169 = vmatpush.bf16.msra.mxu0 %v881
    %1170 = vmatpush.bf16.msra.mxu0 %v877
    %1171 = vmatpush.bf16.msra.mxu0 %v873
    %1172 = vmatpush.bf16.msra.mxu0 %v869
    %1173 = vmatpush.bf16.msra.mxu0 %v865
    %1174 = vmatpush.bf16.msra.mxu0 %v861
    %1175 = vmatpush.bf16.msra.mxu0 %v857
    %1176 = vmatmul.bf16.gmra.mxu0 %v340
    %v1177 = vpop.f32.mrf.mxu0
    %v1178 = vadd.f32 0.0, %v1177
    %v1179 = vpop.f32.mrf.mxu0
    %v1180 = vadd.f32 0.0, %v1179
    %1181 = vdwg.mxu0
    %1182 = vmatpush.bf16.msra.mxu0 %v917
    %1183 = vmatpush.bf16.msra.mxu0 %v913
    %1184 = vmatpush.bf16.msra.mxu0 %v909
    %1185 = vmatpush.bf16.msra.mxu0 %v905
    %1186 = vmatpush.bf16.msra.mxu0 %v901
    %1187 = vmatpush.bf16.msra.mxu0 %v897
    %1188 = vmatpush.bf16.msra.mxu0 %v893
    %1189 = vmatpush.bf16.msra.mxu0 %v889
    %1190 = vmatmul.bf16.gmra.mxu0 %v341
    %v1191 = vpop.f32.mrf.mxu0
    %v1192 = vadd.f32 %v1178, %v1191
    %v1193 = vpop.f32.mrf.mxu0
    %v1194 = vadd.f32 %v1180, %v1193
    %1195 = vdwg.mxu0
    %1196 = vmatpush.bf16.msra.mxu0 %v949
    %1197 = vmatpush.bf16.msra.mxu0 %v945
    %1198 = vmatpush.bf16.msra.mxu0 %v941
    %1199 = vmatpush.bf16.msra.mxu0 %v937
    %1200 = vmatpush.bf16.msra.mxu0 %v933
    %1201 = vmatpush.bf16.msra.mxu0 %v929
    %1202 = vmatpush.bf16.msra.mxu0 %v925
    %1203 = vmatpush.bf16.msra.mxu0 %v921
    %1204 = vmatmul.bf16.gmra.mxu0 %v342
    %v1205 = vpop.f32.mrf.mxu0
    %v1206 = vadd.f32 %v1192, %v1205
    %v1207 = vpop.f32.mrf.mxu0
    %v1208 = vadd.f32 %v1194, %v1207
    %1209 = vdwg.mxu0
    %1210 = vmatpush.bf16.msra.mxu0 %v981
    %1211 = vmatpush.bf16.msra.mxu0 %v977
    %1212 = vmatpush.bf16.msra.mxu0 %v973
    %1213 = vmatpush.bf16.msra.mxu0 %v969
    %1214 = vmatpush.bf16.msra.mxu0 %v965
    %1215 = vmatpush.bf16.msra.mxu0 %v961
    %1216 = vmatpush.bf16.msra.mxu0 %v957
    %1217 = vmatpush.bf16.msra.mxu0 %v953
    %1218 = vmatmul.bf16.gmra.mxu0 %v343
    %v1219 = vpop.f32.mrf.mxu0
    %v1220 = vadd.f32 %v1206, %v1219
    %v1221 = vpop.f32.mrf.mxu0
    %v1222 = vadd.f32 %v1208, %v1221
    %1223 = vdwg.mxu0
    %1224 = vmatpush.bf16.msra.mxu0 %v886
    %1225 = vmatpush.bf16.msra.mxu0 %v882
    %1226 = vmatpush.bf16.msra.mxu0 %v878
    %1227 = vmatpush.bf16.msra.mxu0 %v874
    %1228 = vmatpush.bf16.msra.mxu0 %v870
    %1229 = vmatpush.bf16.msra.mxu0 %v866
    %1230 = vmatpush.bf16.msra.mxu0 %v862
    %1231 = vmatpush.bf16.msra.mxu0 %v858
    %1232 = vmatmul.bf16.gmra.mxu0 %v340
    %v1233 = vpop.f32.mrf.mxu0
    %v1234 = vadd.f32 0.0, %v1233
    %v1235 = vpop.f32.mrf.mxu0
    %v1236 = vadd.f32 0.0, %v1235
    %1237 = vdwg.mxu0
    %1238 = vmatpush.bf16.msra.mxu0 %v918
    %1239 = vmatpush.bf16.msra.mxu0 %v914
    %1240 = vmatpush.bf16.msra.mxu0 %v910
    %1241 = vmatpush.bf16.msra.mxu0 %v906
    %1242 = vmatpush.bf16.msra.mxu0 %v902
    %1243 = vmatpush.bf16.msra.mxu0 %v898
    %1244 = vmatpush.bf16.msra.mxu0 %v894
    %1245 = vmatpush.bf16.msra.mxu0 %v890
    %1246 = vmatmul.bf16.gmra.mxu0 %v341
    %v1247 = vpop.f32.mrf.mxu0
    %v1248 = vadd.f32 %v1234, %v1247
    %v1249 = vpop.f32.mrf.mxu0
    %v1250 = vadd.f32 %v1236, %v1249
    %1251 = vdwg.mxu0
    %1252 = vmatpush.bf16.msra.mxu0 %v950
    %1253 = vmatpush.bf16.msra.mxu0 %v946
    %1254 = vmatpush.bf16.msra.mxu0 %v942
    %1255 = vmatpush.bf16.msra.mxu0 %v938
    %1256 = vmatpush.bf16.msra.mxu0 %v934
    %1257 = vmatpush.bf16.msra.mxu0 %v930
    %1258 = vmatpush.bf16.msra.mxu0 %v926
    %1259 = vmatpush.bf16.msra.mxu0 %v922
    %1260 = vmatmul.bf16.gmra.mxu0 %v342
    %v1261 = vpop.f32.mrf.mxu0
    %v1262 = vadd.f32 %v1248, %v1261
    %v1263 = vpop.f32.mrf.mxu0
    %v1264 = vadd.f32 %v1250, %v1263
    %1265 = vdwg.mxu0
    %1266 = vmatpush.bf16.msra.mxu0 %v982
    %1267 = vmatpush.bf16.msra.mxu0 %v978
    %1268 = vmatpush.bf16.msra.mxu0 %v974
    %1269 = vmatpush.bf16.msra.mxu0 %v970
    %1270 = vmatpush.bf16.msra.mxu0 %v966
    %1271 = vmatpush.bf16.msra.mxu0 %v962
    %1272 = vmatpush.bf16.msra.mxu0 %v958
    %1273 = vmatpush.bf16.msra.mxu0 %v954
    %1274 = vmatmul.bf16.gmra.mxu0 %v343
    %v1275 = vpop.f32.mrf.mxu0
    %v1276 = vadd.f32 %v1262, %v1275
    %v1277 = vpop.f32.mrf.mxu0
    %v1278 = vadd.f32 %v1264, %v1277
    %1279 = vdwg.mxu0
    %1280 = vmatpush.bf16.msra.mxu0 %v887
    %1281 = vmatpush.bf16.msra.mxu0 %v883
    %1282 = vmatpush.bf16.msra.mxu0 %v879
    %1283 = vmatpush.bf16.msra.mxu0 %v875
    %1284 = vmatpush.bf16.msra.mxu0 %v871
    %1285 = vmatpush.bf16.msra.mxu0 %v867
    %1286 = vmatpush.bf16.msra.mxu0 %v863
    %1287 = vmatpush.bf16.msra.mxu0 %v859
    %1288 = vmatmul.bf16.gmra.mxu0 %v340
    %v1289 = vpop.f32.mrf.mxu0
    %v1290 = vadd.f32 0.0, %v1289
    %v1291 = vpop.f32.mrf.mxu0
    %v1292 = vadd.f32 0.0, %v1291
    %1293 = vdwg.mxu0
    %1294 = vmatpush.bf16.msra.mxu0 %v919
    %1295 = vmatpush.bf16.msra.mxu0 %v915
    %1296 = vmatpush.bf16.msra.mxu0 %v911
    %1297 = vmatpush.bf16.msra.mxu0 %v907
    %1298 = vmatpush.bf16.msra.mxu0 %v903
    %1299 = vmatpush.bf16.msra.mxu0 %v899
    %1300 = vmatpush.bf16.msra.mxu0 %v895
    %1301 = vmatpush.bf16.msra.mxu0 %v891
    %1302 = vmatmul.bf16.gmra.mxu0 %v341
    %v1303 = vpop.f32.mrf.mxu0
    %v1304 = vadd.f32 %v1290, %v1303
    %v1305 = vpop.f32.mrf.mxu0
    %v1306 = vadd.f32 %v1292, %v1305
    %1307 = vdwg.mxu0
    %1308 = vmatpush.bf16.msra.mxu0 %v951
    %1309 = vmatpush.bf16.msra.mxu0 %v947
    %1310 = vmatpush.bf16.msra.mxu0 %v943
    %1311 = vmatpush.bf16.msra.mxu0 %v939
    %1312 = vmatpush.bf16.msra.mxu0 %v935
    %1313 = vmatpush.bf16.msra.mxu0 %v931
    %1314 = vmatpush.bf16.msra.mxu0 %v927
    %1315 = vmatpush.bf16.msra.mxu0 %v923
    %1316 = vmatmul.bf16.gmra.mxu0 %v342
    %v1317 = vpop.f32.mrf.mxu0
    %v1318 = vadd.f32 %v1304, %v1317
    %v1319 = vpop.f32.mrf.mxu0
    %v1320 = vadd.f32 %v1306, %v1319
    %1321 = vdwg.mxu0
    %1322 = vmatpush.bf16.msra.mxu0 %v983
    %1323 = vmatpush.bf16.msra.mxu0 %v979
    %1324 = vmatpush.bf16.msra.mxu0 %v975
    %1325 = vmatpush.bf16.msra.mxu0 %v971
    %1326 = vmatpush.bf16.msra.mxu0 %v967
    %1327 = vmatpush.bf16.msra.mxu0 %v963
    %1328 = vmatpush.bf16.msra.mxu0 %v959
    %1329 = vmatpush.bf16.msra.mxu0 %v955
    %1330 = vmatmul.bf16.gmra.mxu0 %v343
    %v1331 = vpop.f32.mrf.mxu0
    %v1332 = vadd.f32 %v1318, %v1331
    %v1333 = vpop.f32.mrf.mxu0
    %v1334 = vadd.f32 %v1320, %v1333
    %1335 = vdwg.mxu0
    %v1336 = vld [vmem:[#allocation8] sm:$0xff]
    %v1337 = vld [vmem:[#allocation8 + $0x8] sm:$0xff]
    %v1338 = vld [vmem:[#allocation8 + $0x10] sm:$0xff]
    %v1339 = vld [vmem:[#allocation8 + $0x18] sm:$0xff]
    %v1340 = vld [vmem:[#allocation8 + $0x20] sm:$0xff]
    %v1341 = vld [vmem:[#allocation8 + $0x28] sm:$0xff]
    %v1342 = vld [vmem:[#allocation8 + $0x30] sm:$0xff]
    %v1343 = vld [vmem:[#allocation8 + $0x38] sm:$0xff]
    %v1344 = vld [vmem:[#allocation8 + $0x40] sm:$0xff]
    %v1345 = vld [vmem:[#allocation8 + $0x48] sm:$0xff]
    %v1346 = vld [vmem:[#allocation8 + $0x50] sm:$0xff]
    %v1347 = vld [vmem:[#allocation8 + $0x58] sm:$0xff]
    %v1348 = vld [vmem:[#allocation8 + $0x60] sm:$0xff]
    %v1349 = vld [vmem:[#allocation8 + $0x68] sm:$0xff]
    %v1350 = vld [vmem:[#allocation8 + $0x70] sm:$0xff]
    %v1351 = vld [vmem:[#allocation8 + $0x78] sm:$0xff]
    %v1352 = vld [vmem:[#allocation8 + $0x80] sm:$0xff]
    %v1353 = vld [vmem:[#allocation8 + $0x88] sm:$0xff]
    %v1354 = vld [vmem:[#allocation8 + $0x90] sm:$0xff]
    %v1355 = vld [vmem:[#allocation8 + $0x98] sm:$0xff]
    %v1356 = vld [vmem:[#allocation8 + $0xa0] sm:$0xff]
    %v1357 = vld [vmem:[#allocation8 + $0xa8] sm:$0xff]
    %v1358 = vld [vmem:[#allocation8 + $0xb0] sm:$0xff]
    %v1359 = vld [vmem:[#allocation8 + $0xb8] sm:$0xff]
    %v1360 = vld [vmem:[#allocation8 + $0xc0] sm:$0xff]
    %v1361 = vld [vmem:[#allocation8 + $0xc8] sm:$0xff]
    %v1362 = vld [vmem:[#allocation8 + $0xd0] sm:$0xff]
    %v1363 = vld [vmem:[#allocation8 + $0xd8] sm:$0xff]
    %v1364 = vld [vmem:[#allocation8 + $0xe0] sm:$0xff]
    %v1365 = vld [vmem:[#allocation8 + $0xe8] sm:$0xff]
    %v1366 = vld [vmem:[#allocation8 + $0xf0] sm:$0xff]
    %v1367 = vld [vmem:[#allocation8 + $0xf8] sm:$0xff]
    %v1368 = vld [vmem:[#allocation8 + $0x100] sm:$0xff]
    %v1369 = vld [vmem:[#allocation8 + $0x108] sm:$0xff]
    %v1370 = vld [vmem:[#allocation8 + $0x110] sm:$0xff]
    %v1371 = vld [vmem:[#allocation8 + $0x118] sm:$0xff]
    %v1372 = vld [vmem:[#allocation8 + $0x120] sm:$0xff]
    %v1373 = vld [vmem:[#allocation8 + $0x128] sm:$0xff]
    %v1374 = vld [vmem:[#allocation8 + $0x130] sm:$0xff]
    %v1375 = vld [vmem:[#allocation8 + $0x138] sm:$0xff]
    %v1376 = vld [vmem:[#allocation8 + $0x140] sm:$0xff]
    %v1377 = vld [vmem:[#allocation8 + $0x148] sm:$0xff]
    %v1378 = vld [vmem:[#allocation8 + $0x150] sm:$0xff]
    %v1379 = vld [vmem:[#allocation8 + $0x158] sm:$0xff]
    %v1380 = vld [vmem:[#allocation8 + $0x160] sm:$0xff]
    %v1381 = vld [vmem:[#allocation8 + $0x168] sm:$0xff]
    %v1382 = vld [vmem:[#allocation8 + $0x170] sm:$0xff]
    %v1383 = vld [vmem:[#allocation8 + $0x178] sm:$0xff]
    %v1384 = vld [vmem:[#allocation8 + $0x180] sm:$0xff]
    %v1385 = vld [vmem:[#allocation8 + $0x188] sm:$0xff]
    %v1386 = vld [vmem:[#allocation8 + $0x190] sm:$0xff]
    %v1387 = vld [vmem:[#allocation8 + $0x198] sm:$0xff]
    %v1388 = vld [vmem:[#allocation8 + $0x1a0] sm:$0xff]
    %v1389 = vld [vmem:[#allocation8 + $0x1a8] sm:$0xff]
    %v1390 = vld [vmem:[#allocation8 + $0x1b0] sm:$0xff]
    %v1391 = vld [vmem:[#allocation8 + $0x1b8] sm:$0xff]
    %v1392 = vld [vmem:[#allocation8 + $0x1c0] sm:$0xff]
    %v1393 = vld [vmem:[#allocation8 + $0x1c8] sm:$0xff]
    %v1394 = vld [vmem:[#allocation8 + $0x1d0] sm:$0xff]
    %v1395 = vld [vmem:[#allocation8 + $0x1d8] sm:$0xff]
    %v1396 = vld [vmem:[#allocation8 + $0x1e0] sm:$0xff]
    %v1397 = vld [vmem:[#allocation8 + $0x1e8] sm:$0xff]
    %v1398 = vld [vmem:[#allocation8 + $0x1f0] sm:$0xff]
    %v1399 = vld [vmem:[#allocation8 + $0x1f8] sm:$0xff]
    %v1400 = vld [vmem:[#allocation8 + $0x200] sm:$0xff]
    %v1401 = vld [vmem:[#allocation8 + $0x208] sm:$0xff]
    %v1402 = vld [vmem:[#allocation8 + $0x210] sm:$0xff]
    %v1403 = vld [vmem:[#allocation8 + $0x218] sm:$0xff]
    %v1404 = vld [vmem:[#allocation8 + $0x220] sm:$0xff]
    %v1405 = vld [vmem:[#allocation8 + $0x228] sm:$0xff]
    %v1406 = vld [vmem:[#allocation8 + $0x230] sm:$0xff]
    %v1407 = vld [vmem:[#allocation8 + $0x238] sm:$0xff]
    %v1408 = vld [vmem:[#allocation8 + $0x240] sm:$0xff]
    %v1409 = vld [vmem:[#allocation8 + $0x248] sm:$0xff]
    %v1410 = vld [vmem:[#allocation8 + $0x250] sm:$0xff]
    %v1411 = vld [vmem:[#allocation8 + $0x258] sm:$0xff]
    %v1412 = vld [vmem:[#allocation8 + $0x260] sm:$0xff]
    %v1413 = vld [vmem:[#allocation8 + $0x268] sm:$0xff]
    %v1414 = vld [vmem:[#allocation8 + $0x270] sm:$0xff]
    %v1415 = vld [vmem:[#allocation8 + $0x278] sm:$0xff]
    %v1416 = vld [vmem:[#allocation8 + $0x280] sm:$0xff]
    %v1417 = vld [vmem:[#allocation8 + $0x288] sm:$0xff]
    %v1418 = vld [vmem:[#allocation8 + $0x290] sm:$0xff]
    %v1419 = vld [vmem:[#allocation8 + $0x298] sm:$0xff]
    %v1420 = vld [vmem:[#allocation8 + $0x2a0] sm:$0xff]
    %v1421 = vld [vmem:[#allocation8 + $0x2a8] sm:$0xff]
    %v1422 = vld [vmem:[#allocation8 + $0x2b0] sm:$0xff]
    %v1423 = vld [vmem:[#allocation8 + $0x2b8] sm:$0xff]
    %v1424 = vld [vmem:[#allocation8 + $0x2c0] sm:$0xff]
    %v1425 = vld [vmem:[#allocation8 + $0x2c8] sm:$0xff]
    %v1426 = vld [vmem:[#allocation8 + $0x2d0] sm:$0xff]
    %v1427 = vld [vmem:[#allocation8 + $0x2d8] sm:$0xff]
    %v1428 = vld [vmem:[#allocation8 + $0x2e0] sm:$0xff]
    %v1429 = vld [vmem:[#allocation8 + $0x2e8] sm:$0xff]
    %v1430 = vld [vmem:[#allocation8 + $0x2f0] sm:$0xff]
    %v1431 = vld [vmem:[#allocation8 + $0x2f8] sm:$0xff]
    %v1432 = vld [vmem:[#allocation8 + $0x300] sm:$0xff]
    %v1433 = vld [vmem:[#allocation8 + $0x308] sm:$0xff]
    %v1434 = vld [vmem:[#allocation8 + $0x310] sm:$0xff]
    %v1435 = vld [vmem:[#allocation8 + $0x318] sm:$0xff]
    %v1436 = vld [vmem:[#allocation8 + $0x320] sm:$0xff]
    %v1437 = vld [vmem:[#allocation8 + $0x328] sm:$0xff]
    %v1438 = vld [vmem:[#allocation8 + $0x330] sm:$0xff]
    %v1439 = vld [vmem:[#allocation8 + $0x338] sm:$0xff]
    %v1440 = vld [vmem:[#allocation8 + $0x340] sm:$0xff]
    %v1441 = vld [vmem:[#allocation8 + $0x348] sm:$0xff]
    %v1442 = vld [vmem:[#allocation8 + $0x350] sm:$0xff]
    %v1443 = vld [vmem:[#allocation8 + $0x358] sm:$0xff]
    %v1444 = vld [vmem:[#allocation8 + $0x360] sm:$0xff]
    %v1445 = vld [vmem:[#allocation8 + $0x368] sm:$0xff]
    %v1446 = vld [vmem:[#allocation8 + $0x370] sm:$0xff]
    %v1447 = vld [vmem:[#allocation8 + $0x378] sm:$0xff]
    %v1448 = vld [vmem:[#allocation8 + $0x380] sm:$0xff]
    %v1449 = vld [vmem:[#allocation8 + $0x388] sm:$0xff]
    %v1450 = vld [vmem:[#allocation8 + $0x390] sm:$0xff]
    %v1451 = vld [vmem:[#allocation8 + $0x398] sm:$0xff]
    %v1452 = vld [vmem:[#allocation8 + $0x3a0] sm:$0xff]
    %v1453 = vld [vmem:[#allocation8 + $0x3a8] sm:$0xff]
    %v1454 = vld [vmem:[#allocation8 + $0x3b0] sm:$0xff]
    %v1455 = vld [vmem:[#allocation8 + $0x3b8] sm:$0xff]
    %v1456 = vld [vmem:[#allocation8 + $0x3c0] sm:$0xff]
    %v1457 = vld [vmem:[#allocation8 + $0x3c8] sm:$0xff]
    %v1458 = vld [vmem:[#allocation8 + $0x3d0] sm:$0xff]
    %v1459 = vld [vmem:[#allocation8 + $0x3d8] sm:$0xff]
    %v1460 = vld [vmem:[#allocation8 + $0x3e0] sm:$0xff]
    %v1461 = vld [vmem:[#allocation8 + $0x3e8] sm:$0xff]
    %v1462 = vld [vmem:[#allocation8 + $0x3f0] sm:$0xff]
    %v1463 = vld [vmem:[#allocation8 + $0x3f8] sm:$0xff]
    %v1592 = vunpack.c.l.b16 %v1336
    %v1593 = vunpack.c.h.b16 %v1336
    %v1594 = vunpack.c.l.b16 %v1337
    %v1595 = vunpack.c.h.b16 %v1337
    %v1596 = vunpack.c.l.b16 %v1338
    %v1597 = vunpack.c.h.b16 %v1338
    %v1598 = vunpack.c.l.b16 %v1339
    %v1599 = vunpack.c.h.b16 %v1339
    %v1600 = vunpack.c.l.b16 %v1340
    %v1601 = vunpack.c.h.b16 %v1340
    %v1602 = vunpack.c.l.b16 %v1341
    %v1603 = vunpack.c.h.b16 %v1341
    %v1604 = vunpack.c.l.b16 %v1342
    %v1605 = vunpack.c.h.b16 %v1342
    %v1606 = vunpack.c.l.b16 %v1343
    %v1607 = vunpack.c.h.b16 %v1343
    %v1608 = vunpack.c.l.b16 %v1344
    %v1609 = vunpack.c.h.b16 %v1344
    %v1610 = vunpack.c.l.b16 %v1345
    %v1611 = vunpack.c.h.b16 %v1345
    %v1612 = vunpack.c.l.b16 %v1346
    %v1613 = vunpack.c.h.b16 %v1346
    %v1614 = vunpack.c.l.b16 %v1347
    %v1615 = vunpack.c.h.b16 %v1347
    %v1616 = vunpack.c.l.b16 %v1348
    %v1617 = vunpack.c.h.b16 %v1348
    %v1618 = vunpack.c.l.b16 %v1349
    %v1619 = vunpack.c.h.b16 %v1349
    %v1620 = vunpack.c.l.b16 %v1350
    %v1621 = vunpack.c.h.b16 %v1350
    %v1622 = vunpack.c.l.b16 %v1351
    %v1623 = vunpack.c.h.b16 %v1351
    %v1624 = vunpack.c.l.b16 %v1352
    %v1625 = vunpack.c.h.b16 %v1352
    %v1626 = vunpack.c.l.b16 %v1353
    %v1627 = vunpack.c.h.b16 %v1353
    %v1628 = vunpack.c.l.b16 %v1354
    %v1629 = vunpack.c.h.b16 %v1354
    %v1630 = vunpack.c.l.b16 %v1355
    %v1631 = vunpack.c.h.b16 %v1355
    %v1632 = vunpack.c.l.b16 %v1356
    %v1633 = vunpack.c.h.b16 %v1356
    %v1634 = vunpack.c.l.b16 %v1357
    %v1635 = vunpack.c.h.b16 %v1357
    %v1636 = vunpack.c.l.b16 %v1358
    %v1637 = vunpack.c.h.b16 %v1358
    %v1638 = vunpack.c.l.b16 %v1359
    %v1639 = vunpack.c.h.b16 %v1359
    %v1640 = vunpack.c.l.b16 %v1360
    %v1641 = vunpack.c.h.b16 %v1360
    %v1642 = vunpack.c.l.b16 %v1361
    %v1643 = vunpack.c.h.b16 %v1361
    %v1644 = vunpack.c.l.b16 %v1362
    %v1645 = vunpack.c.h.b16 %v1362
    %v1646 = vunpack.c.l.b16 %v1363
    %v1647 = vunpack.c.h.b16 %v1363
    %v1648 = vunpack.c.l.b16 %v1364
    %v1649 = vunpack.c.h.b16 %v1364
    %v1650 = vunpack.c.l.b16 %v1365
    %v1651 = vunpack.c.h.b16 %v1365
    %v1652 = vunpack.c.l.b16 %v1366
    %v1653 = vunpack.c.h.b16 %v1366
    %v1654 = vunpack.c.l.b16 %v1367
    %v1655 = vunpack.c.h.b16 %v1367
    %v1656 = vunpack.c.l.b16 %v1368
    %v1657 = vunpack.c.h.b16 %v1368
    %v1658 = vunpack.c.l.b16 %v1369
    %v1659 = vunpack.c.h.b16 %v1369
    %v1660 = vunpack.c.l.b16 %v1370
    %v1661 = vunpack.c.h.b16 %v1370
    %v1662 = vunpack.c.l.b16 %v1371
    %v1663 = vunpack.c.h.b16 %v1371
    %v1664 = vunpack.c.l.b16 %v1372
    %v1665 = vunpack.c.h.b16 %v1372
    %v1666 = vunpack.c.l.b16 %v1373
    %v1667 = vunpack.c.h.b16 %v1373
    %v1668 = vunpack.c.l.b16 %v1374
    %v1669 = vunpack.c.h.b16 %v1374
    %v1670 = vunpack.c.l.b16 %v1375
    %v1671 = vunpack.c.h.b16 %v1375
    %v1672 = vunpack.c.l.b16 %v1376
    %v1673 = vunpack.c.h.b16 %v1376
    %v1674 = vunpack.c.l.b16 %v1377
    %v1675 = vunpack.c.h.b16 %v1377
    %v1676 = vunpack.c.l.b16 %v1378
    %v1677 = vunpack.c.h.b16 %v1378
    %v1678 = vunpack.c.l.b16 %v1379
    %v1679 = vunpack.c.h.b16 %v1379
    %v1680 = vunpack.c.l.b16 %v1380
    %v1681 = vunpack.c.h.b16 %v1380
    %v1682 = vunpack.c.l.b16 %v1381
    %v1683 = vunpack.c.h.b16 %v1381
    %v1684 = vunpack.c.l.b16 %v1382
    %v1685 = vunpack.c.h.b16 %v1382
    %v1686 = vunpack.c.l.b16 %v1383
    %v1687 = vunpack.c.h.b16 %v1383
    %v1688 = vunpack.c.l.b16 %v1384
    %v1689 = vunpack.c.h.b16 %v1384
    %v1690 = vunpack.c.l.b16 %v1385
    %v1691 = vunpack.c.h.b16 %v1385
    %v1692 = vunpack.c.l.b16 %v1386
    %v1693 = vunpack.c.h.b16 %v1386
    %v1694 = vunpack.c.l.b16 %v1387
    %v1695 = vunpack.c.h.b16 %v1387
    %v1696 = vunpack.c.l.b16 %v1388
    %v1697 = vunpack.c.h.b16 %v1388
    %v1698 = vunpack.c.l.b16 %v1389
    %v1699 = vunpack.c.h.b16 %v1389
    %v1700 = vunpack.c.l.b16 %v1390
    %v1701 = vunpack.c.h.b16 %v1390
    %v1702 = vunpack.c.l.b16 %v1391
    %v1703 = vunpack.c.h.b16 %v1391
    %v1704 = vunpack.c.l.b16 %v1392
    %v1705 = vunpack.c.h.b16 %v1392
    %v1706 = vunpack.c.l.b16 %v1393
    %v1707 = vunpack.c.h.b16 %v1393
    %v1708 = vunpack.c.l.b16 %v1394
    %v1709 = vunpack.c.h.b16 %v1394
    %v1710 = vunpack.c.l.b16 %v1395
    %v1711 = vunpack.c.h.b16 %v1395
    %v1712 = vunpack.c.l.b16 %v1396
    %v1713 = vunpack.c.h.b16 %v1396
    %v1714 = vunpack.c.l.b16 %v1397
    %v1715 = vunpack.c.h.b16 %v1397
    %v1716 = vunpack.c.l.b16 %v1398
    %v1717 = vunpack.c.h.b16 %v1398
    %v1718 = vunpack.c.l.b16 %v1399
    %v1719 = vunpack.c.h.b16 %v1399
    %v1720 = vunpack.c.l.b16 %v1400
    %v1721 = vunpack.c.h.b16 %v1400
    %v1722 = vunpack.c.l.b16 %v1401
    %v1723 = vunpack.c.h.b16 %v1401
    %v1724 = vunpack.c.l.b16 %v1402
    %v1725 = vunpack.c.h.b16 %v1402
    %v1726 = vunpack.c.l.b16 %v1403
    %v1727 = vunpack.c.h.b16 %v1403
    %v1728 = vunpack.c.l.b16 %v1404
    %v1729 = vunpack.c.h.b16 %v1404
    %v1730 = vunpack.c.l.b16 %v1405
    %v1731 = vunpack.c.h.b16 %v1405
    %v1732 = vunpack.c.l.b16 %v1406
    %v1733 = vunpack.c.h.b16 %v1406
    %v1734 = vunpack.c.l.b16 %v1407
    %v1735 = vunpack.c.h.b16 %v1407
    %v1736 = vunpack.c.l.b16 %v1408
    %v1737 = vunpack.c.h.b16 %v1408
    %v1738 = vunpack.c.l.b16 %v1409
    %v1739 = vunpack.c.h.b16 %v1409
    %v1740 = vunpack.c.l.b16 %v1410
    %v1741 = vunpack.c.h.b16 %v1410
    %v1742 = vunpack.c.l.b16 %v1411
    %v1743 = vunpack.c.h.b16 %v1411
    %v1744 = vunpack.c.l.b16 %v1412
    %v1745 = vunpack.c.h.b16 %v1412
    %v1746 = vunpack.c.l.b16 %v1413
    %v1747 = vunpack.c.h.b16 %v1413
    %v1748 = vunpack.c.l.b16 %v1414
    %v1749 = vunpack.c.h.b16 %v1414
    %v1750 = vunpack.c.l.b16 %v1415
    %v1751 = vunpack.c.h.b16 %v1415
    %v1752 = vunpack.c.l.b16 %v1416
    %v1753 = vunpack.c.h.b16 %v1416
    %v1754 = vunpack.c.l.b16 %v1417
    %v1755 = vunpack.c.h.b16 %v1417
    %v1756 = vunpack.c.l.b16 %v1418
    %v1757 = vunpack.c.h.b16 %v1418
    %v1758 = vunpack.c.l.b16 %v1419
    %v1759 = vunpack.c.h.b16 %v1419
    %v1760 = vunpack.c.l.b16 %v1420
    %v1761 = vunpack.c.h.b16 %v1420
    %v1762 = vunpack.c.l.b16 %v1421
    %v1763 = vunpack.c.h.b16 %v1421
    %v1764 = vunpack.c.l.b16 %v1422
    %v1765 = vunpack.c.h.b16 %v1422
    %v1766 = vunpack.c.l.b16 %v1423
    %v1767 = vunpack.c.h.b16 %v1423
    %v1768 = vunpack.c.l.b16 %v1424
    %v1769 = vunpack.c.h.b16 %v1424
    %v1770 = vunpack.c.l.b16 %v1425
    %v1771 = vunpack.c.h.b16 %v1425
    %v1772 = vunpack.c.l.b16 %v1426
    %v1773 = vunpack.c.h.b16 %v1426
    %v1774 = vunpack.c.l.b16 %v1427
    %v1775 = vunpack.c.h.b16 %v1427
    %v1776 = vunpack.c.l.b16 %v1428
    %v1777 = vunpack.c.h.b16 %v1428
    %v1778 = vunpack.c.l.b16 %v1429
    %v1779 = vunpack.c.h.b16 %v1429
    %v1780 = vunpack.c.l.b16 %v1430
    %v1781 = vunpack.c.h.b16 %v1430
    %v1782 = vunpack.c.l.b16 %v1431
    %v1783 = vunpack.c.h.b16 %v1431
    %v1784 = vunpack.c.l.b16 %v1432
    %v1785 = vunpack.c.h.b16 %v1432
    %v1786 = vunpack.c.l.b16 %v1433
    %v1787 = vunpack.c.h.b16 %v1433
    %v1788 = vunpack.c.l.b16 %v1434
    %v1789 = vunpack.c.h.b16 %v1434
    %v1790 = vunpack.c.l.b16 %v1435
    %v1791 = vunpack.c.h.b16 %v1435
    %v1792 = vunpack.c.l.b16 %v1436
    %v1793 = vunpack.c.h.b16 %v1436
    %v1794 = vunpack.c.l.b16 %v1437
    %v1795 = vunpack.c.h.b16 %v1437
    %v1796 = vunpack.c.l.b16 %v1438
    %v1797 = vunpack.c.h.b16 %v1438
    %v1798 = vunpack.c.l.b16 %v1439
    %v1799 = vunpack.c.h.b16 %v1439
    %v1800 = vunpack.c.l.b16 %v1440
    %v1801 = vunpack.c.h.b16 %v1440
    %v1802 = vunpack.c.l.b16 %v1441
    %v1803 = vunpack.c.h.b16 %v1441
    %v1804 = vunpack.c.l.b16 %v1442
    %v1805 = vunpack.c.h.b16 %v1442
    %v1806 = vunpack.c.l.b16 %v1443
    %v1807 = vunpack.c.h.b16 %v1443
    %v1808 = vunpack.c.l.b16 %v1444
    %v1809 = vunpack.c.h.b16 %v1444
    %v1810 = vunpack.c.l.b16 %v1445
    %v1811 = vunpack.c.h.b16 %v1445
    %v1812 = vunpack.c.l.b16 %v1446
    %v1813 = vunpack.c.h.b16 %v1446
    %v1814 = vunpack.c.l.b16 %v1447
    %v1815 = vunpack.c.h.b16 %v1447
    %v1816 = vunpack.c.l.b16 %v1448
    %v1817 = vunpack.c.h.b16 %v1448
    %v1818 = vunpack.c.l.b16 %v1449
    %v1819 = vunpack.c.h.b16 %v1449
    %v1820 = vunpack.c.l.b16 %v1450
    %v1821 = vunpack.c.h.b16 %v1450
    %v1822 = vunpack.c.l.b16 %v1451
    %v1823 = vunpack.c.h.b16 %v1451
    %v1824 = vunpack.c.l.b16 %v1452
    %v1825 = vunpack.c.h.b16 %v1452
    %v1826 = vunpack.c.l.b16 %v1453
    %v1827 = vunpack.c.h.b16 %v1453
    %v1828 = vunpack.c.l.b16 %v1454
    %v1829 = vunpack.c.h.b16 %v1454
    %v1830 = vunpack.c.l.b16 %v1455
    %v1831 = vunpack.c.h.b16 %v1455
    %v1832 = vunpack.c.l.b16 %v1456
    %v1833 = vunpack.c.h.b16 %v1456
    %v1834 = vunpack.c.l.b16 %v1457
    %v1835 = vunpack.c.h.b16 %v1457
    %v1836 = vunpack.c.l.b16 %v1458
    %v1837 = vunpack.c.h.b16 %v1458
    %v1838 = vunpack.c.l.b16 %v1459
    %v1839 = vunpack.c.h.b16 %v1459
    %v1840 = vunpack.c.l.b16 %v1460
    %v1841 = vunpack.c.h.b16 %v1460
    %v1842 = vunpack.c.l.b16 %v1461
    %v1843 = vunpack.c.h.b16 %v1461
    %v1844 = vunpack.c.l.b16 %v1462
    %v1845 = vunpack.c.h.b16 %v1462
    %v1846 = vunpack.c.l.b16 %v1463
    %v1847 = vunpack.c.h.b16 %v1463
    %v1848 = vpack.c.b16 %v1596, %v1592
    %v1849 = vpack.c.b16 %v1597, %v1593
    %v1850 = vpack.c.b16 %v1598, %v1594
    %v1851 = vpack.c.b16 %v1599, %v1595
    %v1852 = vpack.c.b16 %v1604, %v1600
    %v1853 = vpack.c.b16 %v1605, %v1601
    %v1854 = vpack.c.b16 %v1606, %v1602
    %v1855 = vpack.c.b16 %v1607, %v1603
    %v1856 = vpack.c.b16 %v1612, %v1608
    %v1857 = vpack.c.b16 %v1613, %v1609
    %v1858 = vpack.c.b16 %v1614, %v1610
    %v1859 = vpack.c.b16 %v1615, %v1611
    %v1860 = vpack.c.b16 %v1620, %v1616
    %v1861 = vpack.c.b16 %v1621, %v1617
    %v1862 = vpack.c.b16 %v1622, %v1618
    %v1863 = vpack.c.b16 %v1623, %v1619
    %v1864 = vpack.c.b16 %v1628, %v1624
    %v1865 = vpack.c.b16 %v1629, %v1625
    %v1866 = vpack.c.b16 %v1630, %v1626
    %v1867 = vpack.c.b16 %v1631, %v1627
    %v1868 = vpack.c.b16 %v1636, %v1632
    %v1869 = vpack.c.b16 %v1637, %v1633
    %v1870 = vpack.c.b16 %v1638, %v1634
    %v1871 = vpack.c.b16 %v1639, %v1635
    %v1872 = vpack.c.b16 %v1644, %v1640
    %v1873 = vpack.c.b16 %v1645, %v1641
    %v1874 = vpack.c.b16 %v1646, %v1642
    %v1875 = vpack.c.b16 %v1647, %v1643
    %v1876 = vpack.c.b16 %v1652, %v1648
    %v1877 = vpack.c.b16 %v1653, %v1649
    %v1878 = vpack.c.b16 %v1654, %v1650
    %v1879 = vpack.c.b16 %v1655, %v1651
    %v1880 = vpack.c.b16 %v1660, %v1656
    %v1881 = vpack.c.b16 %v1661, %v1657
    %v1882 = vpack.c.b16 %v1662, %v1658
    %v1883 = vpack.c.b16 %v1663, %v1659
    %v1884 = vpack.c.b16 %v1668, %v1664
    %v1885 = vpack.c.b16 %v1669, %v1665
    %v1886 = vpack.c.b16 %v1670, %v1666
    %v1887 = vpack.c.b16 %v1671, %v1667
    %v1888 = vpack.c.b16 %v1676, %v1672
    %v1889 = vpack.c.b16 %v1677, %v1673
    %v1890 = vpack.c.b16 %v1678, %v1674
    %v1891 = vpack.c.b16 %v1679, %v1675
    %v1892 = vpack.c.b16 %v1684, %v1680
    %v1893 = vpack.c.b16 %v1685, %v1681
    %v1894 = vpack.c.b16 %v1686, %v1682
    %v1895 = vpack.c.b16 %v1687, %v1683
    %v1896 = vpack.c.b16 %v1692, %v1688
    %v1897 = vpack.c.b16 %v1693, %v1689
    %v1898 = vpack.c.b16 %v1694, %v1690
    %v1899 = vpack.c.b16 %v1695, %v1691
    %v1900 = vpack.c.b16 %v1700, %v1696
    %v1901 = vpack.c.b16 %v1701, %v1697
    %v1902 = vpack.c.b16 %v1702, %v1698
    %v1903 = vpack.c.b16 %v1703, %v1699
    %v1904 = vpack.c.b16 %v1708, %v1704
    %v1905 = vpack.c.b16 %v1709, %v1705
    %v1906 = vpack.c.b16 %v1710, %v1706
    %v1907 = vpack.c.b16 %v1711, %v1707
    %v1908 = vpack.c.b16 %v1716, %v1712
    %v1909 = vpack.c.b16 %v1717, %v1713
    %v1910 = vpack.c.b16 %v1718, %v1714
    %v1911 = vpack.c.b16 %v1719, %v1715
    %v1912 = vpack.c.b16 %v1724, %v1720
    %v1913 = vpack.c.b16 %v1725, %v1721
    %v1914 = vpack.c.b16 %v1726, %v1722
    %v1915 = vpack.c.b16 %v1727, %v1723
    %v1916 = vpack.c.b16 %v1732, %v1728
    %v1917 = vpack.c.b16 %v1733, %v1729
    %v1918 = vpack.c.b16 %v1734, %v1730
    %v1919 = vpack.c.b16 %v1735, %v1731
    %v1920 = vpack.c.b16 %v1740, %v1736
    %v1921 = vpack.c.b16 %v1741, %v1737
    %v1922 = vpack.c.b16 %v1742, %v1738
    %v1923 = vpack.c.b16 %v1743, %v1739
    %v1924 = vpack.c.b16 %v1748, %v1744
    %v1925 = vpack.c.b16 %v1749, %v1745
    %v1926 = vpack.c.b16 %v1750, %v1746
    %v1927 = vpack.c.b16 %v1751, %v1747
    %v1928 = vpack.c.b16 %v1756, %v1752
    %v1929 = vpack.c.b16 %v1757, %v1753
    %v1930 = vpack.c.b16 %v1758, %v1754
    %v1931 = vpack.c.b16 %v1759, %v1755
    %v1932 = vpack.c.b16 %v1764, %v1760
    %v1933 = vpack.c.b16 %v1765, %v1761
    %v1934 = vpack.c.b16 %v1766, %v1762
    %v1935 = vpack.c.b16 %v1767, %v1763
    %v1936 = vpack.c.b16 %v1772, %v1768
    %v1937 = vpack.c.b16 %v1773, %v1769
    %v1938 = vpack.c.b16 %v1774, %v1770
    %v1939 = vpack.c.b16 %v1775, %v1771
    %v1940 = vpack.c.b16 %v1780, %v1776
    %v1941 = vpack.c.b16 %v1781, %v1777
    %v1942 = vpack.c.b16 %v1782, %v1778
    %v1943 = vpack.c.b16 %v1783, %v1779
    %v1944 = vpack.c.b16 %v1788, %v1784
    %v1945 = vpack.c.b16 %v1789, %v1785
    %v1946 = vpack.c.b16 %v1790, %v1786
    %v1947 = vpack.c.b16 %v1791, %v1787
    %v1948 = vpack.c.b16 %v1796, %v1792
    %v1949 = vpack.c.b16 %v1797, %v1793
    %v1950 = vpack.c.b16 %v1798, %v1794
    %v1951 = vpack.c.b16 %v1799, %v1795
    %v1952 = vpack.c.b16 %v1804, %v1800
    %v1953 = vpack.c.b16 %v1805, %v1801
    %v1954 = vpack.c.b16 %v1806, %v1802
    %v1955 = vpack.c.b16 %v1807, %v1803
    %v1956 = vpack.c.b16 %v1812, %v1808
    %v1957 = vpack.c.b16 %v1813, %v1809
    %v1958 = vpack.c.b16 %v1814, %v1810
    %v1959 = vpack.c.b16 %v1815, %v1811
    %v1960 = vpack.c.b16 %v1820, %v1816
    %v1961 = vpack.c.b16 %v1821, %v1817
    %v1962 = vpack.c.b16 %v1822, %v1818
    %v1963 = vpack.c.b16 %v1823, %v1819
    %v1964 = vpack.c.b16 %v1828, %v1824
    %v1965 = vpack.c.b16 %v1829, %v1825
    %v1966 = vpack.c.b16 %v1830, %v1826
    %v1967 = vpack.c.b16 %v1831, %v1827
    %v1968 = vpack.c.b16 %v1836, %v1832
    %v1969 = vpack.c.b16 %v1837, %v1833
    %v1970 = vpack.c.b16 %v1838, %v1834
    %v1971 = vpack.c.b16 %v1839, %v1835
    %v1972 = vpack.c.b16 %v1844, %v1840
    %v1973 = vpack.c.b16 %v1845, %v1841
    %v1974 = vpack.c.b16 %v1846, %v1842
    %v1975 = vpack.c.b16 %v1847, %v1843
    %2104 = vmatpush.bf16.msra.mxu0 %v1876
    %2105 = vmatpush.bf16.msra.mxu0 %v1872
    %2106 = vmatpush.bf16.msra.mxu0 %v1868
    %2107 = vmatpush.bf16.msra.mxu0 %v1864
    %2108 = vmatpush.bf16.msra.mxu0 %v1860
    %2109 = vmatpush.bf16.msra.mxu0 %v1856
    %2110 = vmatpush.bf16.msra.mxu0 %v1852
    %2111 = vmatpush.bf16.msra.mxu0 %v1848
    %2112 = vmatmul.bf16.gmra.mxu0 %v340
    %v2113 = vpop.f32.mrf.mxu0
    %v2114 = vadd.f32 0.0, %v2113
    %v2115 = vpop.f32.mrf.mxu0
    %v2116 = vadd.f32 0.0, %v2115
    %2117 = vdwg.mxu0
    %2118 = vmatpush.bf16.msra.mxu0 %v1908
    %2119 = vmatpush.bf16.msra.mxu0 %v1904
    %2120 = vmatpush.bf16.msra.mxu0 %v1900
    %2121 = vmatpush.bf16.msra.mxu0 %v1896
    %2122 = vmatpush.bf16.msra.mxu0 %v1892
    %2123 = vmatpush.bf16.msra.mxu0 %v1888
    %2124 = vmatpush.bf16.msra.mxu0 %v1884
    %2125 = vmatpush.bf16.msra.mxu0 %v1880
    %2126 = vmatmul.bf16.gmra.mxu0 %v341
    %v2127 = vpop.f32.mrf.mxu0
    %v2128 = vadd.f32 %v2114, %v2127
    %v2129 = vpop.f32.mrf.mxu0
    %v2130 = vadd.f32 %v2116, %v2129
    %2131 = vdwg.mxu0
    %2132 = vmatpush.bf16.msra.mxu0 %v1940
    %2133 = vmatpush.bf16.msra.mxu0 %v1936
    %2134 = vmatpush.bf16.msra.mxu0 %v1932
    %2135 = vmatpush.bf16.msra.mxu0 %v1928
    %2136 = vmatpush.bf16.msra.mxu0 %v1924
    %2137 = vmatpush.bf16.msra.mxu0 %v1920
    %2138 = vmatpush.bf16.msra.mxu0 %v1916
    %2139 = vmatpush.bf16.msra.mxu0 %v1912
    %2140 = vmatmul.bf16.gmra.mxu0 %v342
    %v2141 = vpop.f32.mrf.mxu0
    %v2142 = vadd.f32 %v2128, %v2141
    %v2143 = vpop.f32.mrf.mxu0
    %v2144 = vadd.f32 %v2130, %v2143
    %2145 = vdwg.mxu0
    %2146 = vmatpush.bf16.msra.mxu0 %v1972
    %2147 = vmatpush.bf16.msra.mxu0 %v1968
    %2148 = vmatpush.bf16.msra.mxu0 %v1964
    %2149 = vmatpush.bf16.msra.mxu0 %v1960
    %2150 = vmatpush.bf16.msra.mxu0 %v1956
    %2151 = vmatpush.bf16.msra.mxu0 %v1952
    %2152 = vmatpush.bf16.msra.mxu0 %v1948
    %2153 = vmatpush.bf16.msra.mxu0 %v1944
    %2154 = vmatmul.bf16.gmra.mxu0 %v343
    %v2155 = vpop.f32.mrf.mxu0
    %v2156 = vadd.f32 %v2142, %v2155
    %v2157 = vpop.f32.mrf.mxu0
    %v2158 = vadd.f32 %v2144, %v2157
    %2159 = vdwg.mxu0
    %2160 = vmatpush.bf16.msra.mxu0 %v1877
    %2161 = vmatpush.bf16.msra.mxu0 %v1873
    %2162 = vmatpush.bf16.msra.mxu0 %v1869
    %2163 = vmatpush.bf16.msra.mxu0 %v1865
    %2164 = vmatpush.bf16.msra.mxu0 %v1861
    %2165 = vmatpush.bf16.msra.mxu0 %v1857
    %2166 = vmatpush.bf16.msra.mxu0 %v1853
    %2167 = vmatpush.bf16.msra.mxu0 %v1849
    %2168 = vmatmul.bf16.gmra.mxu0 %v340
    %v2169 = vpop.f32.mrf.mxu0
    %v2170 = vadd.f32 0.0, %v2169
    %v2171 = vpop.f32.mrf.mxu0
    %v2172 = vadd.f32 0.0, %v2171
    %2173 = vdwg.mxu0
    %2174 = vmatpush.bf16.msra.mxu0 %v1909
    %2175 = vmatpush.bf16.msra.mxu0 %v1905
    %2176 = vmatpush.bf16.msra.mxu0 %v1901
    %2177 = vmatpush.bf16.msra.mxu0 %v1897
    %2178 = vmatpush.bf16.msra.mxu0 %v1893
    %2179 = vmatpush.bf16.msra.mxu0 %v1889
    %2180 = vmatpush.bf16.msra.mxu0 %v1885
    %2181 = vmatpush.bf16.msra.mxu0 %v1881
    %2182 = vmatmul.bf16.gmra.mxu0 %v341
    %v2183 = vpop.f32.mrf.mxu0
    %v2184 = vadd.f32 %v2170, %v2183
    %v2185 = vpop.f32.mrf.mxu0
    %v2186 = vadd.f32 %v2172, %v2185
    %2187 = vdwg.mxu0
    %2188 = vmatpush.bf16.msra.mxu0 %v1941
    %2189 = vmatpush.bf16.msra.mxu0 %v1937
    %2190 = vmatpush.bf16.msra.mxu0 %v1933
    %2191 = vmatpush.bf16.msra.mxu0 %v1929
    %2192 = vmatpush.bf16.msra.mxu0 %v1925
    %2193 = vmatpush.bf16.msra.mxu0 %v1921
    %2194 = vmatpush.bf16.msra.mxu0 %v1917
    %2195 = vmatpush.bf16.msra.mxu0 %v1913
    %2196 = vmatmul.bf16.gmra.mxu0 %v342
    %v2197 = vpop.f32.mrf.mxu0
    %v2198 = vadd.f32 %v2184, %v2197
    %v2199 = vpop.f32.mrf.mxu0
    %v2200 = vadd.f32 %v2186, %v2199
    %2201 = vdwg.mxu0
    %2202 = vmatpush.bf16.msra.mxu0 %v1973
    %2203 = vmatpush.bf16.msra.mxu0 %v1969
    %2204 = vmatpush.bf16.msra.mxu0 %v1965
    %2205 = vmatpush.bf16.msra.mxu0 %v1961
    %2206 = vmatpush.bf16.msra.mxu0 %v1957
    %2207 = vmatpush.bf16.msra.mxu0 %v1953
    %2208 = vmatpush.bf16.msra.mxu0 %v1949
    %2209 = vmatpush.bf16.msra.mxu0 %v1945
    %2210 = vmatmul.bf16.gmra.mxu0 %v343
    %v2211 = vpop.f32.mrf.mxu0
    %v2212 = vadd.f32 %v2198, %v2211
    %v2213 = vpop.f32.mrf.mxu0
    %v2214 = vadd.f32 %v2200, %v2213
    %2215 = vdwg.mxu0
    %2216 = vmatpush.bf16.msra.mxu0 %v1878
    %2217 = vmatpush.bf16.msra.mxu0 %v1874
    %2218 = vmatpush.bf16.msra.mxu0 %v1870
    %2219 = vmatpush.bf16.msra.mxu0 %v1866
    %2220 = vmatpush.bf16.msra.mxu0 %v1862
    %2221 = vmatpush.bf16.msra.mxu0 %v1858
    %2222 = vmatpush.bf16.msra.mxu0 %v1854
    %2223 = vmatpush.bf16.msra.mxu0 %v1850
    %2224 = vmatmul.bf16.gmra.mxu0 %v340
    %v2225 = vpop.f32.mrf.mxu0
    %v2226 = vadd.f32 0.0, %v2225
    %v2227 = vpop.f32.mrf.mxu0
    %v2228 = vadd.f32 0.0, %v2227
    %2229 = vdwg.mxu0
    %2230 = vmatpush.bf16.msra.mxu0 %v1910
    %2231 = vmatpush.bf16.msra.mxu0 %v1906
    %2232 = vmatpush.bf16.msra.mxu0 %v1902
    %2233 = vmatpush.bf16.msra.mxu0 %v1898
    %2234 = vmatpush.bf16.msra.mxu0 %v1894
    %2235 = vmatpush.bf16.msra.mxu0 %v1890
    %2236 = vmatpush.bf16.msra.mxu0 %v1886
    %2237 = vmatpush.bf16.msra.mxu0 %v1882
    %2238 = vmatmul.bf16.gmra.mxu0 %v341
    %v2239 = vpop.f32.mrf.mxu0
    %v2240 = vadd.f32 %v2226, %v2239
    %v2241 = vpop.f32.mrf.mxu0
    %v2242 = vadd.f32 %v2228, %v2241
    %2243 = vdwg.mxu0
    %2244 = vmatpush.bf16.msra.mxu0 %v1942
    %2245 = vmatpush.bf16.msra.mxu0 %v1938
    %2246 = vmatpush.bf16.msra.mxu0 %v1934
    %2247 = vmatpush.bf16.msra.mxu0 %v1930
    %2248 = vmatpush.bf16.msra.mxu0 %v1926
    %2249 = vmatpush.bf16.msra.mxu0 %v1922
    %2250 = vmatpush.bf16.msra.mxu0 %v1918
    %2251 = vmatpush.bf16.msra.mxu0 %v1914
    %2252 = vmatmul.bf16.gmra.mxu0 %v342
    %v2253 = vpop.f32.mrf.mxu0
    %v2254 = vadd.f32 %v2240, %v2253
    %v2255 = vpop.f32.mrf.mxu0
    %v2256 = vadd.f32 %v2242, %v2255
    %2257 = vdwg.mxu0
    %2258 = vmatpush.bf16.msra.mxu0 %v1974
    %2259 = vmatpush.bf16.msra.mxu0 %v1970
    %2260 = vmatpush.bf16.msra.mxu0 %v1966
    %2261 = vmatpush.bf16.msra.mxu0 %v1962
    %2262 = vmatpush.bf16.msra.mxu0 %v1958
    %2263 = vmatpush.bf16.msra.mxu0 %v1954
    %2264 = vmatpush.bf16.msra.mxu0 %v1950
    %2265 = vmatpush.bf16.msra.mxu0 %v1946
    %2266 = vmatmul.bf16.gmra.mxu0 %v343
    %v2267 = vpop.f32.mrf.mxu0
    %v2268 = vadd.f32 %v2254, %v2267
    %v2269 = vpop.f32.mrf.mxu0
    %v2270 = vadd.f32 %v2256, %v2269
    %2271 = vdwg.mxu0
    %2272 = vmatpush.bf16.msra.mxu0 %v1879
    %2273 = vmatpush.bf16.msra.mxu0 %v1875
    %2274 = vmatpush.bf16.msra.mxu0 %v1871
    %2275 = vmatpush.bf16.msra.mxu0 %v1867
    %2276 = vmatpush.bf16.msra.mxu0 %v1863
    %2277 = vmatpush.bf16.msra.mxu0 %v1859
    %2278 = vmatpush.bf16.msra.mxu0 %v1855
    %2279 = vmatpush.bf16.msra.mxu0 %v1851
    %2280 = vmatmul.bf16.gmra.mxu0 %v340
    %v2281 = vpop.f32.mrf.mxu0
    %v2282 = vadd.f32 0.0, %v2281
    %v2283 = vpop.f32.mrf.mxu0
    %v2284 = vadd.f32 0.0, %v2283
    %2285 = vdwg.mxu0
    %2286 = vmatpush.bf16.msra.mxu0 %v1911
    %2287 = vmatpush.bf16.msra.mxu0 %v1907
    %2288 = vmatpush.bf16.msra.mxu0 %v1903
    %2289 = vmatpush.bf16.msra.mxu0 %v1899
    %2290 = vmatpush.bf16.msra.mxu0 %v1895
    %2291 = vmatpush.bf16.msra.mxu0 %v1891
    %2292 = vmatpush.bf16.msra.mxu0 %v1887
    %2293 = vmatpush.bf16.msra.mxu0 %v1883
    %2294 = vmatmul.bf16.gmra.mxu0 %v341
    %v2295 = vpop.f32.mrf.mxu0
    %v2296 = vadd.f32 %v2282, %v2295
    %v2297 = vpop.f32.mrf.mxu0
    %v2298 = vadd.f32 %v2284, %v2297
    %2299 = vdwg.mxu0
    %2300 = vmatpush.bf16.msra.mxu0 %v1943
    %2301 = vmatpush.bf16.msra.mxu0 %v1939
    %2302 = vmatpush.bf16.msra.mxu0 %v1935
    %2303 = vmatpush.bf16.msra.mxu0 %v1931
    %2304 = vmatpush.bf16.msra.mxu0 %v1927
    %2305 = vmatpush.bf16.msra.mxu0 %v1923
    %2306 = vmatpush.bf16.msra.mxu0 %v1919
    %2307 = vmatpush.bf16.msra.mxu0 %v1915
    %2308 = vmatmul.bf16.gmra.mxu0 %v342
    %v2309 = vpop.f32.mrf.mxu0
    %v2310 = vadd.f32 %v2296, %v2309
    %v2311 = vpop.f32.mrf.mxu0
    %v2312 = vadd.f32 %v2298, %v2311
    %2313 = vdwg.mxu0
    %2314 = vmatpush.bf16.msra.mxu0 %v1975
    %2315 = vmatpush.bf16.msra.mxu0 %v1971
    %2316 = vmatpush.bf16.msra.mxu0 %v1967
    %2317 = vmatpush.bf16.msra.mxu0 %v1963
    %2318 = vmatpush.bf16.msra.mxu0 %v1959
    %2319 = vmatpush.bf16.msra.mxu0 %v1955
    %2320 = vmatpush.bf16.msra.mxu0 %v1951
    %2321 = vmatpush.bf16.msra.mxu0 %v1947
    %2322 = vmatmul.bf16.gmra.mxu0 %v343
    %v2323 = vpop.f32.mrf.mxu0
    %v2324 = vadd.f32 %v2310, %v2323
    %v2325 = vpop.f32.mrf.mxu0
    %v2326 = vadd.f32 %v2312, %v2325
    %2327 = vdwg.mxu0
    %v2328 = vpack.c.bf16 %v1220, %v1164
    %v2329 = vpack.c.bf16 %v1332, %v1276
    %v2330 = vpack.c.bf16 %v1222, %v1166
    %v2331 = vpack.c.bf16 %v1334, %v1278
    %2332 = vst [vmem:[#allocation10] sm:$0xff] %v2328
    %2333 = vst [vmem:[#allocation10 + $0x8] sm:$0xff] %v2329
    %2334 = vst [vmem:[#allocation10 + $0x10] sm:$0xff] %v2330
    %2335 = vst [vmem:[#allocation10 + $0x18] sm:$0xff] %v2331
    %v2336 = vpack.c.bf16 %v2212, %v2156
    %v2337 = vpack.c.bf16 %v2324, %v2268
    %v2338 = vpack.c.bf16 %v2214, %v2158
    %v2339 = vpack.c.bf16 %v2326, %v2270
    %2340 = vst [vmem:[#allocation11] sm:$0xff] %v2336
    %2341 = vst [vmem:[#allocation11 + $0x8] sm:$0xff] %v2337
    %2342 = vst [vmem:[#allocation11 + $0x10] sm:$0xff] %v2338
    %2343 = vst [vmem:[#allocation11 + $0x18] sm:$0xff] %v2339
    // Predicated region
    $region34: #{tpu_custom_call.1} parent=1 // pred_check
      _
    $region35: #{tpu_custom_call.1} parent=1 // pred_check_branch
      %2345 = sbr.rel (0) target = $region37
    $region36: #{tpu_custom_call.1} parent=1 // pred_region
      %2347 = vsyncadd [#allocation4], 0
      %s2348 = sshll.u32 [#allocation10], 4
      %s2349 = int_to_ptr.vmem [resolvable:$true] %s2348
      %s2350 = sshll.u32 %s4, 4
      %s2351 = int_to_ptr.hbm [resolvable:$true] %s2350
      %2356 = dma.vmem_to_hbm [thread:$0]  %s2349, 512, %s2351, [#allocation4], 256, 256, 16
    $region37: #{tpu_custom_call.1} parent=1 // pred_fallthru
      _
    // Predicated region
    $region38: #{tpu_custom_call.1} parent=1 // pred_check
      _
    $region39: #{tpu_custom_call.1} parent=1 // pred_check_branch
      %2358 = sbr.rel (0) target = $region41
    $region40: #{tpu_custom_call.1} parent=1 // pred_region
      %2360 = vsyncadd [#allocation12], 0
      %s2361 = sshll.u32 [#allocation11], 4
      %s2362 = int_to_ptr.vmem [resolvable:$true] %s2361
      %s2363 = sshll.u32 %s5, 4
      %s2364 = int_to_ptr.hbm [resolvable:$true] %s2363
      %2369 = dma.vmem_to_hbm [thread:$0]  %s2362, 512, %s2364, [#allocation12], 256, 256, 16
    $region41: #{tpu_custom_call.1} parent=1 // pred_fallthru
      _
    // Predicated region
    $region42: #{tpu_custom_call.1} parent=1 // pred_check
      _
    $region43: #{tpu_custom_call.1} parent=1 // pred_check_branch
      %2371 = sbr.rel (0) target = $region45
    $region44: #{tpu_custom_call.1} parent=1 // pred_region
      %2373 = dma.done [#allocation4], 512
    $region45: #{tpu_custom_call.1} parent=1 // pred_fallthru
      _
    // Predicated region
    $region46: #{tpu_custom_call.1} parent=1 // pred_check
      _
    $region47: #{tpu_custom_call.1} parent=1 // pred_check_branch
      %2375 = sbr.rel (0) target = $region49
    $region48: #{tpu_custom_call.1} parent=1 // pred_region
      %2377 = dma.done [#allocation12], 512
    $region49: #{tpu_custom_call.1} parent=1 // pred_fallthru
      _
    %2378 = vsyncpa [#allocation3], 1
    %2379 = vsyncpa [#allocation6], 1
    %2380 = vsyncpa [#allocation9], 1
    %2381 = vsyncpa [#allocation4], 1
    %2382 = vsyncpa [#allocation12], 1

</llo_original>
